<compile_context>
chip_gen: v5e
topology: v5e:2x2
jax: 0.10.0
libtpu: 0.0.40
codegen_flags: <defaults>
</compile_context>

<pallas_src>
import math

import jax
import jax.numpy as jnp
import numpy as np
from jax import lax
from jax.experimental import pallas as pl
from jax.experimental.pallas import tpu as pltpu

_LANE = 128
_SUBLANE = 8


def _round_up(n, m):
    return ((n + m - 1) // m) * m


def _vmem_budget():
    """Generation-aware VMEM planning budget + explicit scoped limit."""
    try:
        phys = int(pltpu.get_tpu_info().vmem_capacity_bytes)
    except Exception:
        phys = 64 * 1024 * 1024       # conservative (v7x-sized) fallback
    budget = int(phys * 0.70)         # ~90 MiB on v5e/v6e, ~45 MiB on v7x
    limit = int(phys * 0.75)
    return budget, limit


def _pad_with_bias(t, in_size, use_bias, pad_to):
    """[t | 1 | 0...0] along the last dim, zero-padded to `pad_to` columns."""
    cols = [t]
    if use_bias:
        cols.append(jnp.ones_like(t[..., :1]))
    extra = pad_to - (in_size + int(use_bias))
    if extra > 0:
        cols.append(jnp.zeros(t.shape[:-1] + (extra,), dtype=t.dtype))
    if len(cols) == 1:
        return t
    return jnp.concatenate(cols, axis=-1)


def _pick_seq_tile(seq_pad, fits, cap=1024):
    """Pick the x / output row tile (multiple of 8, <= cap, fits VMEM budget).

    Trades a small amount of row padding against per-grid-step overhead
    (~0.35 us/step) instead of falling back to pathological tile sizes.
    """
    cands = [t for t in range(_SUBLANE, min(seq_pad, cap) + 1, _SUBLANE)
             if fits(t)]
    if not cands:
        return _SUBLANE
    best_ts, best_score = None, None
    for t in cands:
        steps = -(-seq_pad // t)
        padded_rows = steps * t
        # padded_rows ~ HBM store bytes; 32 rows ~ fixed per-step overhead.
        score = (padded_rows + 32 * steps, -t)
        if best_score is None or score < best_score:
            best_score, best_ts = score, t
    return best_ts


def _make_fused_kernel(seq_j, out_pad, hx_pad):
    def kernel(x_ref, y_ref, u_ref, o_ref, tmp_ref):
        # tmp = yb @ U_perm depends only on (y, U): compute once per batch
        # element, keep it resident in VMEM scratch across the row tiles.
        @pl.when(pl.program_id(1) == 0)
        def _():
            t = jnp.dot(y_ref[0], u_ref[...],
                        preferred_element_type=jnp.float32)  # (seq_j, out_pad*hx_pad)
            # Two lane-friendly reshape steps: split the 128-aligned minor dim,
            # then fold the `out` factor into the row (sublane-major) dim.
            t = t.reshape(seq_j, out_pad, hx_pad)
            t = t.reshape(seq_j * out_pad, hx_pad)
            tmp_ref[...] = t.astype(tmp_ref.dtype)
            # TODO(synk): for very large seq_j*out_pad, chunk this matmul over
            # the `out` dimension to bound the transient f32 intermediate.

        # (ts, hx_pad) . (seq_j*out_pad, hx_pad) contracted on the last dims
        # -> (ts, seq_j*out_pad).  Transpose expressed via contraction dims
        # (MXU-native A @ B^T), no explicit .T / XLU relayout.
        scores = lax.dot_general(
            x_ref[0], tmp_ref[...],
            dimension_numbers=(((1,), (1,)), ((), ())),
            preferred_element_type=jnp.float32)
        o_ref[0] = scores.astype(o_ref.dtype)

    return kernel


def _hoisted_kernel(x_ref, tmp_ref, o_ref):
    scores = lax.dot_general(
        x_ref[0], tmp_ref[0],
        dimension_numbers=(((1,), (1,)), ((), ())),
        preferred_element_type=jnp.float32)
    o_ref[0] = scores.astype(o_ref.dtype)


def biaffine_forward(x, y, U, bias_x=True, bias_y=True,
                     compute_dtype=jnp.bfloat16, out_dtype=jnp.float32,
                     precompute_in_kernel=None):
    """Biaffine scorer: (b,s,in), (b,s,in), (in+bx,out,in+by) -> (b,s,s,out).

    compute_dtype: MXU input dtype (bf16 default; f32 for exact parity).
    out_dtype:     output dtype (f32 default; bf16 halves the dominant
                   output-store HBM traffic when the consumer allows it).
    """
    batch, seq_len, in_size = x.shape
    out_size = U.shape[1]
    hx = in_size + int(bias_x)
    hy = in_size + int(bias_y)
    assert U.shape == (hx, out_size, hy), (U.shape, (hx, out_size, hy))

    hx_pad = _round_up(hx, _LANE)
    hy_pad = _round_up(hy, _LANE)

    cdt = jnp.dtype(compute_dtype)
    odt = jnp.dtype(out_dtype)
    in_bytes = cdt.itemsize
    out_bytes = odt.itemsize

    # Column (j) axis: pad seq to a sublane multiple, and pad out_size so the
    # output last dim (seq_j * out_pad) is a multiple of 128 -> lane-dense
    # unmasked stores for the dominant output-write cost.
    seq_j = _round_up(seq_len, _SUBLANE)
    out_pad = _round_up(out_size, _LANE // math.gcd(seq_j, _LANE))

    budget, vmem_limit = _vmem_budget()

    # Single-buffer resident blocks if this Pallas version supports it.
    try:
        pl.BlockSpec((_SUBLANE, _LANE), lambda i: (0, 0),
                     pipeline_mode=pl.Buffered(1))
        single_buf, resident_bufs = True, 1
    except Exception:
        single_buf, resident_bufs = False, 2

    def _fits(ts, fused):
        est = (2 * ts * hx_pad * in_bytes                  # x tiles (double buffered)
               + 2 * ts * seq_j * out_pad * out_bytes      # output tiles
               + ts * seq_j * out_pad * 4)                 # f32 scores before cast
        if fused:
            est += (resident_bufs * seq_j * hy_pad * in_bytes               # y
                    + resident_bufs * hy_pad * out_pad * hx_pad * in_bytes  # U
                    + seq_j * out_pad * hx_pad * in_bytes                   # tmp scratch
                    + seq_j * out_pad * hx_pad * 4)                         # f32 yb@U interm.
        else:
            est += resident_bufs * seq_j * out_pad * hx_pad * in_bytes      # tmp input
        return est <= budget

    fused = precompute_in_kernel
    if fused is None:
        # Fused keeps tmp entirely in VMEM (no extra HBM traffic); fall back
        # to the hoisted precompute when its resident set cannot fit.
        fused = _fits(_SUBLANE, fused=True)
        # TODO(synk): on v7x with batch==1 prefer the hoisted path so both grid
        # axes can be "parallel" (row tiles split across the two TensorCores).

    ts = _pick_seq_tile(seq_j, lambda t: _fits(t, fused))
    n_i_tiles = -(-seq_j // ts)
    seq_i = n_i_tiles * ts
    # TODO(synk): if even ts=8 does not fit (huge seq*out), additionally tile
    # the j/out axis with a tmp recompute-or-carry policy.

    # Fold the bias column in, zero-pad the contraction dims (exact), and pad
    # the row axes to tile multiples (padded rows/cols sliced off at the end).
    xb = _pad_with_bias(x, in_size, bias_x, hx_pad).astype(cdt)
    yb = _pad_with_bias(y, in_size, bias_y, hy_pad).astype(cdt)
    if seq_i > seq_len:
        xb = jnp.pad(xb, ((0, 0), (0, seq_i - seq_len), (0, 0)))
    if seq_j > seq_len:
        yb = jnp.pad(yb, ((0, 0), (0, seq_j - seq_len), (0, 0)))

    # Parameter prep (once): U -> (h2, out, h1), zero-pad all axes, flatten.
    u_perm = jnp.transpose(U, (2, 1, 0)).astype(cdt)              # (hy, out, hx)
    u_perm = jnp.pad(u_perm, ((0, hy_pad - hy), (0, out_pad - out_size),
                              (0, hx_pad - hx)))
    u_flat = u_perm.reshape(hy_pad, out_pad * hx_pad)

    out_shape = jax.ShapeDtypeStruct((batch, seq_i, seq_j * out_pad), odt)
    x_spec = pl.BlockSpec((1, ts, hx_pad), lambda b, it: (b, it, 0))
    o_spec = pl.BlockSpec((1, ts, seq_j * out_pad), lambda b, it: (b, it, 0))

    def _resident(shape, imap):
        if single_buf:
            return pl.BlockSpec(shape, imap, pipeline_mode=pl.Buffered(1))
        return pl.BlockSpec(shape, imap)

    def _cost(extra_bytes):
        flops = (2 * batch * seq_i * seq_j * out_pad * hx_pad
                 + 2 * batch * seq_j * hy_pad * out_pad * hx_pad)
        bytes_accessed = (batch * seq_i * hx_pad * in_bytes
                          + batch * seq_i * seq_j * out_pad * out_bytes
                          + extra_bytes)
        return pl.CostEstimate(flops=int(flops), transcendentals=0,
                               bytes_accessed=int(bytes_accessed))

    def _call_fused():
        kernel = _make_fused_kernel(seq_j, out_pad, hx_pad)
        return pl.pallas_call(
            kernel,
            out_shape=out_shape,
            grid_spec=pltpu.PrefetchScalarGridSpec(
                num_scalar_prefetch=0,
                grid=(batch, n_i_tiles),
                in_specs=[
                    x_spec,                                                    # x tile
                    _resident((1, seq_j, hy_pad), lambda b, it: (b, 0, 0)),    # y (resident)
                    _resident((hy_pad, out_pad * hx_pad),
                              lambda b, it: (0, 0)),                           # U (resident)
                ],
                out_specs=o_spec,
                scratch_shapes=[pltpu.VMEM((seq_j * out_pad, hx_pad), cdt)],
            ),
            compiler_params=pltpu.CompilerParams(
                # batch splits across megacore TensorCores; the row-tile axis
                # carries the per-batch tmp scratch so it runs in order.
                dimension_semantics=("parallel", "arbitrary"),
                vmem_limit_bytes=vmem_limit),
            cost_estimate=_cost(batch * seq_j * hy_pad * in_bytes
                                + hy_pad * out_pad * hx_pad * in_bytes),
        )(xb, yb, u_flat)

    def _call_hoisted():
        # tmp = yb @ U_perm precomputed by XLA, streamed per batch element.
        tmp = jnp.einsum("bsh,hf->bsf", yb, u_flat,
                         preferred_element_type=jnp.float32)
        tmp = tmp.reshape(batch, seq_j * out_pad, hx_pad).astype(cdt)
        return pl.pallas_call(
            _hoisted_kernel,
            out_shape=out_shape,
            grid_spec=pltpu.PrefetchScalarGridSpec(
                num_scalar_prefetch=0,
                grid=(batch, n_i_tiles),
                in_specs=[
                    x_spec,
                    _resident((1, seq_j * out_pad, hx_pad),
                              lambda b, it: (b, 0, 0)),                        # tmp (resident)
                ],
                out_specs=o_spec,
            ),
            compiler_params=pltpu.CompilerParams(
                dimension_semantics=("parallel", "parallel"),
                vmem_limit_bytes=vmem_limit),
            cost_estimate=_cost(batch * seq_j * out_pad * hx_pad * in_bytes),
        )(xb, tmp)

    if fused:
        try:
            out = _call_fused()
        except Exception:
            # Robust fallback (e.g. if this Mosaic version rejects the in-kernel
            # reshape or single-buffered residents): hoist the precompute.
            out = _call_hoisted()
    else:
        out = _call_hoisted()

    # Free row-major view: (b, si, sj*out_pad) -> (b, si, sj, out_pad), then
    # strip padding (a no-op when nothing was padded).
    out = out.reshape(batch, seq_i, seq_j, out_pad)
    return out[:, :seq_len, :seq_len, :out_size]


if __name__ == "__main__":
    # Small shapes consistent with the module's forward.
    batch, seq_len, in_size, out_size = 2, 8, 32, 4

    key = jax.random.PRNGKey(0)
    kx, ky, ku = jax.random.split(key, 3)

    x = jax.random.normal(kx, (batch, seq_len, in_size), dtype=jnp.float32)
    y = jax.random.normal(ky, (batch, seq_len, in_size), dtype=jnp.float32)
    # Deterministic parameter init (torch.randn analogue).
    U = jax.random.normal(ku, (in_size + 1, out_size, in_size + 1),
                          dtype=jnp.float32)

    # Float64 host reference with the exact biaffine semantics.
    xr = np.concatenate([np.asarray(x, np.float64),
                         np.ones((batch, seq_len, 1), np.float64)], axis=-1)
    yr = np.concatenate([np.asarray(y, np.float64),
                         np.ones((batch, seq_len, 1), np.float64)], axis=-1)
    ref = np.einsum("bih,hog,bjg->bijo", xr, np.asarray(U, np.float64), yr)

    # Float32-compute path (parity with the PyTorch float32 forward).
    out_f32 = jax.block_until_ready(
        biaffine_forward(x, y, U, compute_dtype=jnp.float32))
    assert out_f32.shape == (batch, seq_len, seq_len, out_size)
    np.testing.assert_allclose(np.asarray(out_f32, np.float64), ref,
                               rtol=2e-2, atol=5e-1)

    # Default fast path: bfloat16 compute, float32 output.
    out_bf16 = jax.block_until_ready(biaffine_forward(x, y, U))
    assert out_bf16.shape == (batch, seq_len, seq_len, out_size)
    np.testing.assert_allclose(np.asarray(out_bf16, np.float64), ref,
                               rtol=5e-2, atol=1.0)

    print("KERNEL_OK")
</pallas_src>

<mosaic_0001>
module attributes {stable_mosaic.version = 11 : i64} {
  func.func @kernel(%arg0: i32, %arg1: i32, %arg2: memref<1x8x128xf32, #tpu.memory_space<vmem>>, %arg3: memref<1x8x128xf32, #tpu.memory_space<vmem>>, %arg4: memref<128x2048xf32, #tpu.memory_space<vmem>>, %arg5: memref<1x8x128xf32, #tpu.memory_space<vmem>>, %arg6: memref<128x128xf32, #tpu.memory_space<vmem>>) attributes {dimension_semantics = [#tpu.dimension_semantics<parallel>, #tpu.dimension_semantics<arbitrary>], iteration_bounds = array<i64: 2, 1>, scalar_prefetch = 0 : i64, scratch_operands = 1 : i64, tpu.core_type = #tpu.core_type<tc>, window_params = [{transform_indices = @transform_0, window_bounds = array<i64: 1, 8, 128>}, {pipeline_mode = #tpu.pipeline_mode<synchronous>, transform_indices = @transform_1, window_bounds = array<i64: 1, 8, 128>}, {pipeline_mode = #tpu.pipeline_mode<synchronous>, transform_indices = @transform_2, window_bounds = array<i64: 128, 2048>}, {transform_indices = @transform_3, window_bounds = array<i64: 1, 8, 128>}]} {
    %c0_i32 = arith.constant 0 : i32
    %0 = arith.cmpi eq, %arg1, %c0_i32 : i32
    %1 = arith.extui %0 : i1 to i32
    %c0_i32_0 = arith.constant 0 : i32
    %2 = arith.cmpi ne, %1, %c0_i32_0 : i32
    scf.if %2 {
      %c0_8 = arith.constant 0 : index
      %c0_9 = arith.constant 0 : index
      %c0_10 = arith.constant 0 : index
      %10 = vector.load %arg3[%c0_8, %c0_9, %c0_10] : memref<1x8x128xf32, #tpu.memory_space<vmem>>, vector<1x8x128xf32>
      %11 = vector.shape_cast %10 : vector<1x8x128xf32> to vector<8x128xf32>
      %c0_11 = arith.constant 0 : index
      %c0_12 = arith.constant 0 : index
      %12 = vector.load %arg4[%c0_11, %c0_12] : memref<128x2048xf32, #tpu.memory_space<vmem>>, vector<128x2048xf32>
      %cst_13 = arith.constant dense<0.000000e+00> : vector<8x2048xf32>
      %13 = tpu.matmul %11, %12, %cst_13 {dimension_numbers = #tpu.dot_dimension_numbers<[1], [0], [0], [1], [0, 0, 1, 1], [], []>} : vector<8x128xf32>, vector<128x2048xf32>, vector<8x2048xf32> -> vector<8x2048xf32>
      %14 = vector.shape_cast %13 : vector<8x2048xf32> to vector<8x16x128xf32>
      %15 = vector.shape_cast %14 : vector<8x16x128xf32> to vector<128x128xf32>
      %c0_14 = arith.constant 0 : index
      %c0_15 = arith.constant 0 : index
      %16 = vector.load %arg6[%c0_14, %c0_15] : memref<128x128xf32, #tpu.memory_space<vmem>>, vector<128x128xf32>
      tpu.vector_store %arg6[%c0_14, %c0_15], %15 {strides = array<i32>} : memref<128x128xf32, #tpu.memory_space<vmem>>, vector<128x128xf32>,
    } else {
    }
    %c0 = arith.constant 0 : index
    %c0_1 = arith.constant 0 : index
    %c0_2 = arith.constant 0 : index
    %3 = vector.load %arg2[%c0, %c0_1, %c0_2] : memref<1x8x128xf32, #tpu.memory_space<vmem>>, vector<1x8x128xf32>
    %4 = vector.shape_cast %3 : vector<1x8x128xf32> to vector<8x128xf32>
    %c0_3 = arith.constant 0 : index
    %c0_4 = arith.constant 0 : index
    %5 = vector.load %arg6[%c0_3, %c0_4] : memref<128x128xf32, #tpu.memory_space<vmem>>, vector<128x128xf32>
    %cst = arith.constant dense<0.000000e+00> : vector<8x128xf32>
    %6 = tpu.matmul %4, %5, %cst {dimension_numbers = #tpu.dot_dimension_numbers<[1], [1], [0], [0], [0, 0, 1, 0], [], []>} : vector<8x128xf32>, vector<128x128xf32>, vector<8x128xf32> -> vector<8x128xf32>
    %c0_5 = arith.constant 0 : index
    %c0_6 = arith.constant 0 : index
    %c0_7 = arith.constant 0 : index
    %7 = vector.load %arg5[%c0_5, %c0_6, %c0_7] : memref<1x8x128xf32, #tpu.memory_space<vmem>>, vector<1x8x128xf32>
    %8 = vector.shape_cast %7 : vector<1x8x128xf32> to vector<8x128xf32>
    %9 = vector.shape_cast %6 : vector<8x128xf32> to vector<1x8x128xf32>
    tpu.vector_store %arg5[%c0_5, %c0_6, %c0_7], %9 {strides = array<i32>} : memref<1x8x128xf32, #tpu.memory_space<vmem>>, vector<1x8x128xf32>,
    return
  }
  func.func @transform_0(%arg0: i32, %arg1: i32) -> (i32, i32, i32) {
    %c0_i32 = arith.constant 0 : i32
    %c0_i32_0 = arith.constant 0 : i32
    return %arg0, %arg1, %c0_i32 : i32, i32, i32
  }
  func.func @transform_1(%arg0: i32, %arg1: i32) -> (i32, i32, i32) {
    %c0_i32 = arith.constant 0 : i32
    %c0_i32_0 = arith.constant 0 : i32
    %c0_i32_1 = arith.constant 0 : i32
    return %arg0, %c0_i32, %c0_i32_0 : i32, i32, i32
  }
  func.func @transform_2(%arg0: i32, %arg1: i32) -> (i32, i32) {
    %c0_i32 = arith.constant 0 : i32
    %c0_i32_0 = arith.constant 0 : i32
    %c0_i32_1 = arith.constant 0 : i32
    return %c0_i32, %c0_i32_0 : i32, i32
  }
  func.func @transform_3(%arg0: i32, %arg1: i32) -> (i32, i32, i32) {
    %c0_i32 = arith.constant 0 : i32
    %c0_i32_0 = arith.constant 0 : i32
    return %arg0, %arg1, %c0_i32 : i32, i32, i32
  }
}

module attributes {stable_mosaic.version = 11 : i64} {
  func.func @_hoisted_kernel(%arg0: i32, %arg1: i32, %arg2: memref<1x8x128xf32, #tpu.memory_space<vmem>>, %arg3: memref<1x128x128xf32, #tpu.memory_space<vmem>>, %arg4: memref<1x8x128xf32, #tpu.memory_space<vmem>>) attributes {dimension_semantics = [#tpu.dimension_semantics<parallel>, #tpu.dimension_semantics<parallel>], iteration_bounds = array<i64: 2, 1>, scalar_prefetch = 0 : i64, scratch_operands = 0 : i64, tpu.core_type = #tpu.core_type<tc>, window_params = [{transform_indices = @transform_0, window_bounds = array<i64: 1, 8, 128>}, {pipeline_mode = #tpu.pipeline_mode<synchronous>, transform_indices = @transform_1, window_bounds = array<i64: 1, 128, 128>}, {transform_indices = @transform_2, window_bounds = array<i64: 1, 8, 128>}]} {
    %c0 = arith.constant 0 : index
    %c0_0 = arith.constant 0 : index
    %c0_1 = arith.constant 0 : index
    %0 = vector.load %arg2[%c0, %c0_0, %c0_1] : memref<1x8x128xf32, #tpu.memory_space<vmem>>, vector<1x8x128xf32>
    %1 = vector.shape_cast %0 : vector<1x8x128xf32> to vector<8x128xf32>
    %c0_2 = arith.constant 0 : index
    %c0_3 = arith.constant 0 : index
    %c0_4 = arith.constant 0 : index
    %2 = vector.load %arg3[%c0_2, %c0_3, %c0_4] : memref<1x128x128xf32, #tpu.memory_space<vmem>>, vector<1x128x128xf32>
    %3 = vector.shape_cast %2 : vector<1x128x128xf32> to vector<128x128xf32>
    %cst = arith.constant dense<0.000000e+00> : vector<8x128xf32>
    %4 = tpu.matmul %1, %3, %cst {dimension_numbers = #tpu.dot_dimension_numbers<[1], [1], [0], [0], [0, 0, 1, 0], [], []>} : vector<8x128xf32>, vector<128x128xf32>, vector<8x128xf32> -> vector<8x128xf32>
    %c0_5 = arith.constant 0 : index
    %c0_6 = arith.constant 0 : index
    %c0_7 = arith.constant 0 : index
    %5 = vector.load %arg4[%c0_5, %c0_6, %c0_7] : memref<1x8x128xf32, #tpu.memory_space<vmem>>, vector<1x8x128xf32>
    %6 = vector.shape_cast %5 : vector<1x8x128xf32> to vector<8x128xf32>
    %7 = vector.shape_cast %4 : vector<8x128xf32> to vector<1x8x128xf32>
    tpu.vector_store %arg4[%c0_5, %c0_6, %c0_7], %7 {strides = array<i32>} : memref<1x8x128xf32, #tpu.memory_space<vmem>>, vector<1x8x128xf32>,
    return
  }
  func.func @transform_0(%arg0: i32, %arg1: i32) -> (i32, i32, i32) {
    %c0_i32 = arith.constant 0 : i32
    %c0_i32_0 = arith.constant 0 : i32
    return %arg0, %arg1, %c0_i32 : i32, i32, i32
  }
  func.func @transform_1(%arg0: i32, %arg1: i32) -> (i32, i32, i32) {
    %c0_i32 = arith.constant 0 : i32
    %c0_i32_0 = arith.constant 0 : i32
    %c0_i32_1 = arith.constant 0 : i32
    return %arg0, %c0_i32, %c0_i32_0 : i32, i32, i32
  }
  func.func @transform_2(%arg0: i32, %arg1: i32) -> (i32, i32, i32) {
    %c0_i32 = arith.constant 0 : i32
    %c0_i32_0 = arith.constant 0 : i32
    return %arg0, %arg1, %c0_i32 : i32, i32, i32
  }
}

</mosaic_0001>

<llo_original>
// kernel: tpu_custom_call.1
$region0: #{tpu_custom_call.1}
  #allocation0 [shape = 'u32[]', space=smem, size = 0x4, offset = 0x4, fixed_abs, tag = 'smem constant byte address 0x4 - core index']
  #allocation1 [shape = 'u32[72,128]{1,0:T(1,128)}', space=vmem, size = 0x9000, scoped, tag = 'internal scratch']
  #allocation2 [shape = 'f32[128,128]{1,0:T(8,128)}', space=vmem, size = 0x10000, scoped, tag = 'scratch operand']
  %s0 = inlined_call_operand.hbm [shape: f32[2,8,128], index: 0, kind: input, shape index: {}]
  %s1 = inlined_call_operand.hbm [shape: f32[2,8,128], index: 1, kind: input, shape index: {}]
  %s2 = inlined_call_operand.hbm [shape: f32[128,2048], index: 2, kind: input, shape index: {}]
  %s3 = inlined_call_operand.hbm [shape: f32[2,8,128], index: 3, kind: output, shape index: {}]
  %s4 = sld [smem:[#allocation0]]
  $region61: #{tpu_custom_call.1} parent=0
    _
  %s6 = ssub.s32 1, %s4
  %s7 = scalar_select 0, %s6, %s4
  $region1: #{tpu_custom_call.1} parent=0
    #allocation3 [shape = 'u8[8192]{0}', space=vmem, size = 0x2000, scoped, tag = 'input window, operand 0']
    #allocation4 [shape = 's32[2]{0}', space=sflag, size = 0x8, scoped, tag = 'scoped memory for tpu_custom_call.1']
    #allocation5 [shape = 's32[2]{0}', space=sflag, size = 0x8, scoped, tag = 'scoped memory for tpu_custom_call.1']
    #allocation6 [shape = 'u8[4096]{0}', space=vmem, size = 0x1000, scoped, tag = 'input window, operand 1, single buffered']
    #allocation7 [shape = 's32[1]{0}', space=sflag, size = 0x4, scoped, tag = 'scoped memory for tpu_custom_call.1']
    #allocation8 [shape = 'u8[1048576]{0}', space=vmem, size = 0x100000, scoped, tag = 'input window, operand 2, single buffered']
    #allocation9 [shape = 'u8[8192]{0}', space=vmem, size = 0x2000, scoped, tag = 'output window, operand 0']
    %8 = vsyncpa [#allocation4], 0
    %s9 = scalar_lea.sflag [#allocation4], 1
    %10 = vsyncpa %s9, 0
    %11 = vsyncpa [#allocation7], 0
    %12 = vsyncpa [#allocation5], 0
    %s13 = scalar_lea.sflag [#allocation5], 1
    %14 = vsyncpa %s13, 0
    loop: start=0, step=1, limit=4
    $region2: #{tpu_custom_call.1} parent=1 // loop_pre_header
      _
    $region3: #{tpu_custom_call.1} parent=1 // loop_header
      %s16 = sphi 0, %s20
      %p17 = scmp.ge.s32.totalorder %s16, 4
      %s23 = sphi 0, %s35
      %s24 = sphi 0, %s31
      %s25 = sphi 0, %s23
      %s26 = sphi 0, %s24
      %s27 = sphi 0, %s25
      %s28 = sphi 0, %s26
      %s40 = sphi 0, %s42
      %s43 = sphi 0, %s40
      %s44 = sphi 0, %s43
      %s60 = sphi 0, %s44
      %s66 = sphi 0, %s68
      %s69 = sphi 0, %s66
      %s70 = sphi 0, %s69
      %s86 = sphi 0, %s70
      %s90 = sphi 0, %s90
      %s92 = sphi 0, %s90
      %s93 = sphi 0, %s92
      %s107 = sphi 0, %s93
      %s115 = sphi 0, %s117
      %s118 = sphi 0, %s115
      %s119 = sphi 0, %s118
      %s135 = sphi 0, %s119
    $region4: #{tpu_custom_call.1} parent=1 // loop_header_branch
      %19 = sbr.rel (%p17) target = $region8
    $region5: #{tpu_custom_call.1} parent=1 // loop_body
      %s21 = ssub.s32 %s16, 1
      %s22 = ssub.s32 %s16, 2
      %s29 = sadd.s32 1, %s24
      %p30 = scmp.ge.s32.totalorder %s29, 1
      %s31 = scalar_select %p30, 0, %s29
      %s32 = sadd.s32 1, %s23
      %s33 = scalar_select %p30, %s32, %s23
      %p34 = scmp.ge.s32.totalorder %s33, 2
      %s35 = scalar_select %p34, 0, %s33
      %s36 = ssub.s32 %s23, %s35
      %s37 = ssub.s32 %s24, %s31
      %s38 = sor.u32 %s36, %s37
      %p39 = scmp.eq.s32.totalorder %s38, 0
      %s41 = sadd.s32 %s40, 1
      %s42 = scalar_select %p39, %s40, %s41
      %p45 = pneg %p39
      %p46 = scmp.eq.s32.totalorder %s16, 1
      %p47 = por %p45, %p46
      %p48 = scmp.ne.s32.totalorder %s40, %s43
      %p49 = scmp.eq.s32.totalorder %s16, 0
      %p50 = por %p48, %p49
      %p51 = scmp.ne.s32.totalorder %s40, %s43
      %p52 = scmp.eq.s32.totalorder %s21, 1
      %p53 = por %p51, %p52
      %p54 = scmp.ne.s32.totalorder %s43, %s44
      %p55 = scmp.eq.s32.totalorder %s21, 0
      %p56 = por %p54, %p55
      %p57 = scmp.ne.s32.totalorder %s43, %s44
      %p58 = scmp.eq.s32.totalorder %s22, 1
      %p59 = por %p57, %p58
      %p61 = scmp.ne.s32.totalorder %s44, %s60
      %p62 = scmp.eq.s32.totalorder %s22, 0
      %p63 = por %p61, %p62
      %s64 = ssub.s32 %s23, %s35
      %p65 = scmp.eq.s32.totalorder %s64, 0
      %s67 = sadd.s32 %s66, 1
      %s68 = scalar_select %p65, %s66, %s67
      %p71 = pneg %p65
      %p72 = scmp.eq.s32.totalorder %s16, 1
      %p73 = por %p71, %p72
      %p74 = scmp.ne.s32.totalorder %s66, %s69
      %p75 = scmp.eq.s32.totalorder %s16, 0
      %p76 = por %p74, %p75
      %p77 = scmp.ne.s32.totalorder %s66, %s69
      %p78 = scmp.eq.s32.totalorder %s21, 1
      %p79 = por %p77, %p78
      %p80 = scmp.ne.s32.totalorder %s69, %s70
      %p81 = scmp.eq.s32.totalorder %s21, 0
      %p82 = por %p80, %p81
      %p83 = scmp.ne.s32.totalorder %s69, %s70
      %p84 = scmp.eq.s32.totalorder %s22, 1
      %p85 = por %p83, %p84
      %p87 = scmp.ne.s32.totalorder %s70, %s86
      %p88 = scmp.eq.s32.totalorder %s22, 0
      %p89 = por %p87, %p88
      %s91 = sadd.s32 %s90, 1
      %p94 = scmp.eq.s32.totalorder %s16, 1
      %p95 = scmp.ne.s32.totalorder %s90, %s92
      %p96 = scmp.eq.s32.totalorder %s16, 0
      %p97 = por %p95, %p96
      %p98 = scmp.ne.s32.totalorder %s90, %s92
      %p99 = scmp.eq.s32.totalorder %s21, 1
      %p100 = por %p98, %p99
      %p101 = scmp.ne.s32.totalorder %s92, %s93
      %p102 = scmp.eq.s32.totalorder %s21, 0
      %p103 = por %p101, %p102
      %p104 = scmp.ne.s32.totalorder %s92, %s93
      %p105 = scmp.eq.s32.totalorder %s22, 1
      %p106 = por %p104, %p105
      %p108 = scmp.ne.s32.totalorder %s93, %s107
      %p109 = scmp.eq.s32.totalorder %s22, 0
      %p110 = por %p108, %p109
      %s111 = ssub.s32 %s23, %s35
      %s112 = ssub.s32 %s24, %s31
      %s113 = sor.u32 %s111, %s112
      %p114 = scmp.eq.s32.totalorder %s113, 0
      %s116 = sadd.s32 %s115, 1
      %s117 = scalar_select %p114, %s115, %s116
      %p120 = pneg %p114
      %p121 = scmp.eq.s32.totalorder %s16, 1
      %p122 = por %p120, %p121
      %p123 = scmp.ne.s32.totalorder %s115, %s118
      %p124 = scmp.eq.s32.totalorder %s16, 0
      %p125 = por %p123, %p124
      %p126 = scmp.ne.s32.totalorder %s115, %s118
      %p127 = scmp.eq.s32.totalorder %s21, 1
      %p128 = por %p126, %p127
      %p129 = scmp.ne.s32.totalorder %s118, %s119
      %p130 = scmp.eq.s32.totalorder %s21, 0
      %p131 = por %p129, %p130
      %p132 = scmp.ne.s32.totalorder %s118, %s119
      %p133 = scmp.eq.s32.totalorder %s22, 1
      %p134 = por %p132, %p133
      %p136 = scmp.ne.s32.totalorder %s119, %s135
      %p137 = scmp.eq.s32.totalorder %s22, 0
      %p138 = por %p136, %p137
      %p139 = scmp.le.s32.totalorder 1, %s16
      %p140 = scmp.lt.s32.totalorder %s16, 3
      %p141 = pnand %p139, %p140
      %p142 = pneg %p141
      // Predicated region
      $region9: #{tpu_custom_call.1} parent=5 // pred_check
        _
      $region10: #{tpu_custom_call.1} parent=5 // pred_check_branch
        %144 = sbr.rel (%p141) target = $region12
      $region11: #{tpu_custom_call.1} parent=5 // pred_region
        %s145 = ssub.s32 %s16, 1
        // Predicated region
        $region13: #{tpu_custom_call.1} parent=11 // pred_check
          %p146 = pneg %p82
        $region14: #{tpu_custom_call.1} parent=11 // pred_check_branch
          %148 = sbr.rel (%p146) target = $region16
        $region15: #{tpu_custom_call.1} parent=11 // pred_region
          %150 = vsyncadd [#allocation7], 0
          %s151 = smul.addr %s25, 8
          %s152 = scalar_lea.hbm %s1, %s151
          %s154 = sshll.u32 %s152, 4
          %s155 = int_to_ptr.hbm [resolvable:$true] %s154
          %s156 = sshll.u32 [#allocation6], 4
          %s157 = int_to_ptr.vmem [resolvable:$true] %s156
          %159 = dma.hbm_to_vmem [thread:$0]  %s155, 128, %s157, [#allocation7]
        $region16: #{tpu_custom_call.1} parent=11 // pred_fallthru
          _
        // Predicated region
        $region17: #{tpu_custom_call.1} parent=11 // pred_check
          %p160 = pneg %p103
        $region18: #{tpu_custom_call.1} parent=11 // pred_check_branch
          %162 = sbr.rel (%p160) target = $region20
        $region19: #{tpu_custom_call.1} parent=11 // pred_region
          %164 = vsyncadd [#allocation7], 0
          %s165 = sshll.u32 %s2, 4
          %s166 = int_to_ptr.hbm [resolvable:$true] %s165
          %s167 = sshll.u32 [#allocation8], 4
          %s168 = int_to_ptr.vmem [resolvable:$true] %s167
          %173 = dma.hbm_to_vmem [thread:$0]  %s166, 32768, %s168, [#allocation7], 2048, 2048, 128
        $region20: #{tpu_custom_call.1} parent=11 // pred_fallthru
          _
      $region12: #{tpu_custom_call.1} parent=5 // pred_fallthru
        _
      %p174 = scmp.lt.s32.totalorder %s16, 2
      // Predicated region
      $region21: #{tpu_custom_call.1} parent=5 // pred_check
        %p175 = pneg %p174
      $region22: #{tpu_custom_call.1} parent=5 // pred_check_branch
        %177 = sbr.rel (%p175) target = $region24
      $region23: #{tpu_custom_call.1} parent=5 // pred_region
        // Predicated region
        $region25: #{tpu_custom_call.1} parent=23 // pred_check
          %p178 = pneg %p50
        $region26: #{tpu_custom_call.1} parent=23 // pred_check_branch
          %180 = sbr.rel (%p178) target = $region28
        $region27: #{tpu_custom_call.1} parent=23 // pred_region
          %s181 = sand.u32 %s40, 1
          %s182 = scalar_lea.sflag [#allocation4], %s181
          %s183 = sand.u32 %s40, 1
          %s184 = smul.addr %s183, 8
          %s185 = scalar_lea.vmem [#allocation3], %s184
          %187 = vsyncadd %s182, 0
          %s188 = sadd.s32 %s24, %s23
          %s189 = smul.addr %s188, 8
          %s190 = scalar_lea.hbm %s0, %s189
          %s192 = sshll.u32 %s190, 4
          %s193 = int_to_ptr.hbm [resolvable:$true] %s192
          %s194 = sshll.u32 %s185, 4
          %s195 = int_to_ptr.vmem [resolvable:$true] %s194
          %197 = dma.hbm_to_vmem [thread:$0]  %s193, 128, %s195, %s182
        $region28: #{tpu_custom_call.1} parent=23 // pred_fallthru
          _
      $region24: #{tpu_custom_call.1} parent=5 // pred_fallthru
        _
      %p198 = scmp.le.s32.totalorder 1, %s16
      %p199 = scmp.lt.s32.totalorder %s16, 3
      %p200 = pnand %p198, %p199
      %p201 = pneg %p200
      // Predicated region
      $region29: #{tpu_custom_call.1} parent=5 // pred_check
        _
      $region30: #{tpu_custom_call.1} parent=5 // pred_check_branch
        %203 = sbr.rel (%p200) target = $region32
      $region31: #{tpu_custom_call.1} parent=5 // pred_region
        %s204 = ssub.s32 %s16, 1
        %s205 = sand.u32 %s43, 1
        %s206 = scalar_lea.sflag [#allocation4], %s205
        %s207 = sand.u32 %s43, 1
        %s208 = smul.addr %s207, 8
        %s209 = scalar_lea.vmem [#allocation3], %s208
        // Predicated region
        $region33: #{tpu_custom_call.1} parent=31 // pred_check
          %p210 = pneg %p56
        $region34: #{tpu_custom_call.1} parent=31 // pred_check_branch
          %212 = sbr.rel (%p210) target = $region36
        $region35: #{tpu_custom_call.1} parent=31 // pred_region
          %214 = dma.done %s206, 128
        $region36: #{tpu_custom_call.1} parent=31 // pred_fallthru
          _
        // Predicated region
        $region37: #{tpu_custom_call.1} parent=31 // pred_check
          %p215 = pneg %p82
        $region38: #{tpu_custom_call.1} parent=31 // pred_check_branch
          %217 = sbr.rel (%p215) target = $region40
        $region39: #{tpu_custom_call.1} parent=31 // pred_region
          %219 = dma.done [#allocation7], 128
        $region40: #{tpu_custom_call.1} parent=31 // pred_fallthru
          _
        // Predicated region
        $region41: #{tpu_custom_call.1} parent=31 // pred_check
          %p220 = pneg %p103
        $region42: #{tpu_custom_call.1} parent=31 // pred_check_branch
          %222 = sbr.rel (%p220) target = $region44
        $region43: #{tpu_custom_call.1} parent=31 // pred_region
          %224 = dma.done [#allocation7], 32768
        $region44: #{tpu_custom_call.1} parent=31 // pred_fallthru
          _
        %s225 = sand.u32 %s43, 1
        %s226 = scalar_lea.sflag [#allocation4], %s225
        %s227 = sand.u32 %s43, 1
        %s228 = smul.addr %s227, 8
        %s229 = scalar_lea.vmem [#allocation3], %s228
        %p230 = pneg %p56
        %p231 = pneg %p53
        %p232 = pneg %p82
        %p233 = pneg %p79
        %p234 = pneg %p103
        %p235 = pneg %p100
        %p236 = pneg %p131
        %p237 = pneg %p128
        %s238 = sand.u32 %s118, 1
        %s239 = scalar_lea.sflag [#allocation5], %s238
        %s240 = sand.u32 %s118, 1
        %s241 = smul.addr %s240, 8
        %s242 = scalar_lea.vmem [#allocation9], %s241
        %p243 = scmp.eq.s32.totalorder %s26, 0
        // Predicated region
        $region45: #{tpu_custom_call.1} parent=31 // pred_check
          %p244 = pneg %p243
        $region46: #{tpu_custom_call.1} parent=31 // pred_check_branch
          %246 = sbr.rel (%p244) target = $region48
        $region47: #{tpu_custom_call.1} parent=31 // pred_region
          %v247 = vld [vmem:[#allocation6] sm:$0xff]
          %v248 = vld [vmem:[#allocation8] sm:$0xff]
          %v249 = vld [vmem:[#allocation8 + $0x8] sm:$0xff]
          %v250 = vld [vmem:[#allocation8 + $0x10] sm:$0xff]
          %v251 = vld [vmem:[#allocation8 + $0x18] sm:$0xff]
          %v252 = vld [vmem:[#allocation8 + $0x20] sm:$0xff]
          %v253 = vld [vmem:[#allocation8 + $0x28] sm:$0xff]
          %v254 = vld [vmem:[#allocation8 + $0x30] sm:$0xff]
          %v255 = vld [vmem:[#allocation8 + $0x38] sm:$0xff]
          %v256 = vld [vmem:[#allocation8 + $0x40] sm:$0xff]
          %v257 = vld [vmem:[#allocation8 + $0x48] sm:$0xff]
          %v258 = vld [vmem:[#allocation8 + $0x50] sm:$0xff]
          %v259 = vld [vmem:[#allocation8 + $0x58] sm:$0xff]
          %v260 = vld [vmem:[#allocation8 + $0x60] sm:$0xff]
          %v261 = vld [vmem:[#allocation8 + $0x68] sm:$0xff]
          %v262 = vld [vmem:[#allocation8 + $0x70] sm:$0xff]
          %v263 = vld [vmem:[#allocation8 + $0x78] sm:$0xff]
          %v264 = vld [vmem:[#allocation8 + $0x80] sm:$0xff]
          %v265 = vld [vmem:[#allocation8 + $0x88] sm:$0xff]
          %v266 = vld [vmem:[#allocation8 + $0x90] sm:$0xff]
          %v267 = vld [vmem:[#allocation8 + $0x98] sm:$0xff]
          %v268 = vld [vmem:[#allocation8 + $0xa0] sm:$0xff]
          %v269 = vld [vmem:[#allocation8 + $0xa8] sm:$0xff]
          %v270 = vld [vmem:[#allocation8 + $0xb0] sm:$0xff]
          %v271 = vld [vmem:[#allocation8 + $0xb8] sm:$0xff]
          %v272 = vld [vmem:[#allocation8 + $0xc0] sm:$0xff]
          %v273 = vld [vmem:[#allocation8 + $0xc8] sm:$0xff]
          %v274 = vld [vmem:[#allocation8 + $0xd0] sm:$0xff]
          %v275 = vld [vmem:[#allocation8 + $0xd8] sm:$0xff]
          %v276 = vld [vmem:[#allocation8 + $0xe0] sm:$0xff]
          %v277 = vld [vmem:[#allocation8 + $0xe8] sm:$0xff]
          %v278 = vld [vmem:[#allocation8 + $0xf0] sm:$0xff]
          %v279 = vld [vmem:[#allocation8 + $0xf8] sm:$0xff]
          %v280 = vld [vmem:[#allocation8 + $0x100] sm:$0xff]
          %v281 = vld [vmem:[#allocation8 + $0x108] sm:$0xff]
          %v282 = vld [vmem:[#allocation8 + $0x110] sm:$0xff]
          %v283 = vld [vmem:[#allocation8 + $0x118] sm:$0xff]
          %v284 = vld [vmem:[#allocation8 + $0x120] sm:$0xff]
          %v285 = vld [vmem:[#allocation8 + $0x128] sm:$0xff]
          %v286 = vld [vmem:[#allocation8 + $0x130] sm:$0xff]
          %v287 = vld [vmem:[#allocation8 + $0x138] sm:$0xff]
          %v288 = vld [vmem:[#allocation8 + $0x140] sm:$0xff]
          %v289 = vld [vmem:[#allocation8 + $0x148] sm:$0xff]
          %v290 = vld [vmem:[#allocation8 + $0x150] sm:$0xff]
          %v291 = vld [vmem:[#allocation8 + $0x158] sm:$0xff]
          %v292 = vld [vmem:[#allocation8 + $0x160] sm:$0xff]
          %v293 = vld [vmem:[#allocation8 + $0x168] sm:$0xff]
          %v294 = vld [vmem:[#allocation8 + $0x170] sm:$0xff]
          %v295 = vld [vmem:[#allocation8 + $0x178] sm:$0xff]
          %v296 = vld [vmem:[#allocation8 + $0x180] sm:$0xff]
          %v297 = vld [vmem:[#allocation8 + $0x188] sm:$0xff]
          %v298 = vld [vmem:[#allocation8 + $0x190] sm:$0xff]
          %v299 = vld [vmem:[#allocation8 + $0x198] sm:$0xff]
          %v300 = vld [vmem:[#allocation8 + $0x1a0] sm:$0xff]
          %v301 = vld [vmem:[#allocation8 + $0x1a8] sm:$0xff]
          %v302 = vld [vmem:[#allocation8 + $0x1b0] sm:$0xff]
          %v303 = vld [vmem:[#allocation8 + $0x1b8] sm:$0xff]
          %v304 = vld [vmem:[#allocation8 + $0x1c0] sm:$0xff]
          %v305 = vld [vmem:[#allocation8 + $0x1c8] sm:$0xff]
          %v306 = vld [vmem:[#allocation8 + $0x1d0] sm:$0xff]
          %v307 = vld [vmem:[#allocation8 + $0x1d8] sm:$0xff]
          %v308 = vld [vmem:[#allocation8 + $0x1e0] sm:$0xff]
          %v309 = vld [vmem:[#allocation8 + $0x1e8] sm:$0xff]
          %v310 = vld [vmem:[#allocation8 + $0x1f0] sm:$0xff]
          %v311 = vld [vmem:[#allocation8 + $0x1f8] sm:$0xff]
          %v312 = vld [vmem:[#allocation8 + $0x200] sm:$0xff]
          %v313 = vld [vmem:[#allocation8 + $0x208] sm:$0xff]
          %v314 = vld [vmem:[#allocation8 + $0x210] sm:$0xff]
          %v315 = vld [vmem:[#allocation8 + $0x218] sm:$0xff]
          %v316 = vld [vmem:[#allocation8 + $0x220] sm:$0xff]
          %v317 = vld [vmem:[#allocation8 + $0x228] sm:$0xff]
          %v318 = vld [vmem:[#allocation8 + $0x230] sm:$0xff]
          %v319 = vld [vmem:[#allocation8 + $0x238] sm:$0xff]
          %v320 = vld [vmem:[#allocation8 + $0x240] sm:$0xff]
          %v321 = vld [vmem:[#allocation8 + $0x248] sm:$0xff]
          %v322 = vld [vmem:[#allocation8 + $0x250] sm:$0xff]
          %v323 = vld [vmem:[#allocation8 + $0x258] sm:$0xff]
          %v324 = vld [vmem:[#allocation8 + $0x260] sm:$0xff]
          %v325 = vld [vmem:[#allocation8 + $0x268] sm:$0xff]
          %v326 = vld [vmem:[#allocation8 + $0x270] sm:$0xff]
          %v327 = vld [vmem:[#allocation8 + $0x278] sm:$0xff]
          %v328 = vld [vmem:[#allocation8 + $0x280] sm:$0xff]
          %v329 = vld [vmem:[#allocation8 + $0x288] sm:$0xff]
          %v330 = vld [vmem:[#allocation8 + $0x290] sm:$0xff]
          %v331 = vld [vmem:[#allocation8 + $0x298] sm:$0xff]
          %v332 = vld [vmem:[#allocation8 + $0x2a0] sm:$0xff]
          %v333 = vld [vmem:[#allocation8 + $0x2a8] sm:$0xff]
          %v334 = vld [vmem:[#allocation8 + $0x2b0] sm:$0xff]
          %v335 = vld [vmem:[#allocation8 + $0x2b8] sm:$0xff]
          %v336 = vld [vmem:[#allocation8 + $0x2c0] sm:$0xff]
          %v337 = vld [vmem:[#allocation8 + $0x2c8] sm:$0xff]
          %v338 = vld [vmem:[#allocation8 + $0x2d0] sm:$0xff]
          %v339 = vld [vmem:[#allocation8 + $0x2d8] sm:$0xff]
          %v340 = vld [vmem:[#allocation8 + $0x2e0] sm:$0xff]
          %v341 = vld [vmem:[#allocation8 + $0x2e8] sm:$0xff]
          %v342 = vld [vmem:[#allocation8 + $0x2f0] sm:$0xff]
          %v343 = vld [vmem:[#allocation8 + $0x2f8] sm:$0xff]
          %v344 = vld [vmem:[#allocation8 + $0x300] sm:$0xff]
          %v345 = vld [vmem:[#allocation8 + $0x308] sm:$0xff]
          %v346 = vld [vmem:[#allocation8 + $0x310] sm:$0xff]
          %v347 = vld [vmem:[#allocation8 + $0x318] sm:$0xff]
          %v348 = vld [vmem:[#allocation8 + $0x320] sm:$0xff]
          %v349 = vld [vmem:[#allocation8 + $0x328] sm:$0xff]
          %v350 = vld [vmem:[#allocation8 + $0x330] sm:$0xff]
          %v351 = vld [vmem:[#allocation8 + $0x338] sm:$0xff]
          %v352 = vld [vmem:[#allocation8 + $0x340] sm:$0xff]
          %v353 = vld [vmem:[#allocation8 + $0x348] sm:$0xff]
          %v354 = vld [vmem:[#allocation8 + $0x350] sm:$0xff]
          %v355 = vld [vmem:[#allocation8 + $0x358] sm:$0xff]
          %v356 = vld [vmem:[#allocation8 + $0x360] sm:$0xff]
          %v357 = vld [vmem:[#allocation8 + $0x368] sm:$0xff]
          %v358 = vld [vmem:[#allocation8 + $0x370] sm:$0xff]
          %v359 = vld [vmem:[#allocation8 + $0x378] sm:$0xff]
          %v360 = vld [vmem:[#allocation8 + $0x380] sm:$0xff]
          %v361 = vld [vmem:[#allocation8 + $0x388] sm:$0xff]
          %v362 = vld [vmem:[#allocation8 + $0x390] sm:$0xff]
          %v363 = vld [vmem:[#allocation8 + $0x398] sm:$0xff]
          %v364 = vld [vmem:[#allocation8 + $0x3a0] sm:$0xff]
          %v365 = vld [vmem:[#allocation8 + $0x3a8] sm:$0xff]
          %v366 = vld [vmem:[#allocation8 + $0x3b0] sm:$0xff]
          %v367 = vld [vmem:[#allocation8 + $0x3b8] sm:$0xff]
          %v368 = vld [vmem:[#allocation8 + $0x3c0] sm:$0xff]
          %v369 = vld [vmem:[#allocation8 + $0x3c8] sm:$0xff]
          %v370 = vld [vmem:[#allocation8 + $0x3d0] sm:$0xff]
          %v371 = vld [vmem:[#allocation8 + $0x3d8] sm:$0xff]
          %v372 = vld [vmem:[#allocation8 + $0x3e0] sm:$0xff]
          %v373 = vld [vmem:[#allocation8 + $0x3e8] sm:$0xff]
          %v374 = vld [vmem:[#allocation8 + $0x3f0] sm:$0xff]
          %v375 = vld [vmem:[#allocation8 + $0x3f8] sm:$0xff]
          %v376 = vld [vmem:[#allocation8 + $0x400] sm:$0xff]
          %v377 = vld [vmem:[#allocation8 + $0x408] sm:$0xff]
          %v378 = vld [vmem:[#allocation8 + $0x410] sm:$0xff]
          %v379 = vld [vmem:[#allocation8 + $0x418] sm:$0xff]
          %v380 = vld [vmem:[#allocation8 + $0x420] sm:$0xff]
          %v381 = vld [vmem:[#allocation8 + $0x428] sm:$0xff]
          %v382 = vld [vmem:[#allocation8 + $0x430] sm:$0xff]
          %v383 = vld [vmem:[#allocation8 + $0x438] sm:$0xff]
          %v384 = vld [vmem:[#allocation8 + $0x440] sm:$0xff]
          %v385 = vld [vmem:[#allocation8 + $0x448] sm:$0xff]
          %v386 = vld [vmem:[#allocation8 + $0x450] sm:$0xff]
          %v387 = vld [vmem:[#allocation8 + $0x458] sm:$0xff]
          %v388 = vld [vmem:[#allocation8 + $0x460] sm:$0xff]
          %v389 = vld [vmem:[#allocation8 + $0x468] sm:$0xff]
          %v390 = vld [vmem:[#allocation8 + $0x470] sm:$0xff]
          %v391 = vld [vmem:[#allocation8 + $0x478] sm:$0xff]
          %v392 = vld [vmem:[#allocation8 + $0x480] sm:$0xff]
          %v393 = vld [vmem:[#allocation8 + $0x488] sm:$0xff]
          %v394 = vld [vmem:[#allocation8 + $0x490] sm:$0xff]
          %v395 = vld [vmem:[#allocation8 + $0x498] sm:$0xff]
          %v396 = vld [vmem:[#allocation8 + $0x4a0] sm:$0xff]
          %v397 = vld [vmem:[#allocation8 + $0x4a8] sm:$0xff]
          %v398 = vld [vmem:[#allocation8 + $0x4b0] sm:$0xff]
          %v399 = vld [vmem:[#allocation8 + $0x4b8] sm:$0xff]
          %v400 = vld [vmem:[#allocation8 + $0x4c0] sm:$0xff]
          %v401 = vld [vmem:[#allocation8 + $0x4c8] sm:$0xff]
          %v402 = vld [vmem:[#allocation8 + $0x4d0] sm:$0xff]
          %v403 = vld [vmem:[#allocation8 + $0x4d8] sm:$0xff]
          %v404 = vld [vmem:[#allocation8 + $0x4e0] sm:$0xff]
          %v405 = vld [vmem:[#allocation8 + $0x4e8] sm:$0xff]
          %v406 = vld [vmem:[#allocation8 + $0x4f0] sm:$0xff]
          %v407 = vld [vmem:[#allocation8 + $0x4f8] sm:$0xff]
          %v408 = vld [vmem:[#allocation8 + $0x500] sm:$0xff]
          %v409 = vld [vmem:[#allocation8 + $0x508] sm:$0xff]
          %v410 = vld [vmem:[#allocation8 + $0x510] sm:$0xff]
          %v411 = vld [vmem:[#allocation8 + $0x518] sm:$0xff]
          %v412 = vld [vmem:[#allocation8 + $0x520] sm:$0xff]
          %v413 = vld [vmem:[#allocation8 + $0x528] sm:$0xff]
          %v414 = vld [vmem:[#allocation8 + $0x530] sm:$0xff]
          %v415 = vld [vmem:[#allocation8 + $0x538] sm:$0xff]
          %v416 = vld [vmem:[#allocation8 + $0x540] sm:$0xff]
          %v417 = vld [vmem:[#allocation8 + $0x548] sm:$0xff]
          %v418 = vld [vmem:[#allocation8 + $0x550] sm:$0xff]
          %v419 = vld [vmem:[#allocation8 + $0x558] sm:$0xff]
          %v420 = vld [vmem:[#allocation8 + $0x560] sm:$0xff]
          %v421 = vld [vmem:[#allocation8 + $0x568] sm:$0xff]
          %v422 = vld [vmem:[#allocation8 + $0x570] sm:$0xff]
          %v423 = vld [vmem:[#allocation8 + $0x578] sm:$0xff]
          %v424 = vld [vmem:[#allocation8 + $0x580] sm:$0xff]
          %v425 = vld [vmem:[#allocation8 + $0x588] sm:$0xff]
          %v426 = vld [vmem:[#allocation8 + $0x590] sm:$0xff]
          %v427 = vld [vmem:[#allocation8 + $0x598] sm:$0xff]
          %v428 = vld [vmem:[#allocation8 + $0x5a0] sm:$0xff]
          %v429 = vld [vmem:[#allocation8 + $0x5a8] sm:$0xff]
          %v430 = vld [vmem:[#allocation8 + $0x5b0] sm:$0xff]
          %v431 = vld [vmem:[#allocation8 + $0x5b8] sm:$0xff]
          %v432 = vld [vmem:[#allocation8 + $0x5c0] sm:$0xff]
          %v433 = vld [vmem:[#allocation8 + $0x5c8] sm:$0xff]
          %v434 = vld [vmem:[#allocation8 + $0x5d0] sm:$0xff]
          %v435 = vld [vmem:[#allocation8 + $0x5d8] sm:$0xff]
          %v436 = vld [vmem:[#allocation8 + $0x5e0] sm:$0xff]
          %v437 = vld [vmem:[#allocation8 + $0x5e8] sm:$0xff]
          %v438 = vld [vmem:[#allocation8 + $0x5f0] sm:$0xff]
          %v439 = vld [vmem:[#allocation8 + $0x5f8] sm:$0xff]
          %v440 = vld [vmem:[#allocation8 + $0x600] sm:$0xff]
          %v441 = vld [vmem:[#allocation8 + $0x608] sm:$0xff]
          %v442 = vld [vmem:[#allocation8 + $0x610] sm:$0xff]
          %v443 = vld [vmem:[#allocation8 + $0x618] sm:$0xff]
          %v444 = vld [vmem:[#allocation8 + $0x620] sm:$0xff]
          %v445 = vld [vmem:[#allocation8 + $0x628] sm:$0xff]
          %v446 = vld [vmem:[#allocation8 + $0x630] sm:$0xff]
          %v447 = vld [vmem:[#allocation8 + $0x638] sm:$0xff]
          %v448 = vld [vmem:[#allocation8 + $0x640] sm:$0xff]
          %v449 = vld [vmem:[#allocation8 + $0x648] sm:$0xff]
          %v450 = vld [vmem:[#allocation8 + $0x650] sm:$0xff]
          %v451 = vld [vmem:[#allocation8 + $0x658] sm:$0xff]
          %v452 = vld [vmem:[#allocation8 + $0x660] sm:$0xff]
          %v453 = vld [vmem:[#allocation8 + $0x668] sm:$0xff]
          %v454 = vld [vmem:[#allocation8 + $0x670] sm:$0xff]
          %v455 = vld [vmem:[#allocation8 + $0x678] sm:$0xff]
          %v456 = vld [vmem:[#allocation8 + $0x680] sm:$0xff]
          %v457 = vld [vmem:[#allocation8 + $0x688] sm:$0xff]
          %v458 = vld [vmem:[#allocation8 + $0x690] sm:$0xff]
          %v459 = vld [vmem:[#allocation8 + $0x698] sm:$0xff]
          %v460 = vld [vmem:[#allocation8 + $0x6a0] sm:$0xff]
          %v461 = vld [vmem:[#allocation8 + $0x6a8] sm:$0xff]
          %v462 = vld [vmem:[#allocation8 + $0x6b0] sm:$0xff]
          %v463 = vld [vmem:[#allocation8 + $0x6b8] sm:$0xff]
          %v464 = vld [vmem:[#allocation8 + $0x6c0] sm:$0xff]
          %v465 = vld [vmem:[#allocation8 + $0x6c8] sm:$0xff]
          %v466 = vld [vmem:[#allocation8 + $0x6d0] sm:$0xff]
          %v467 = vld [vmem:[#allocation8 + $0x6d8] sm:$0xff]
          %v468 = vld [vmem:[#allocation8 + $0x6e0] sm:$0xff]
          %v469 = vld [vmem:[#allocation8 + $0x6e8] sm:$0xff]
          %v470 = vld [vmem:[#allocation8 + $0x6f0] sm:$0xff]
          %v471 = vld [vmem:[#allocation8 + $0x6f8] sm:$0xff]
          %v472 = vld [vmem:[#allocation8 + $0x700] sm:$0xff]
          %v473 = vld [vmem:[#allocation8 + $0x708] sm:$0xff]
          %v474 = vld [vmem:[#allocation8 + $0x710] sm:$0xff]
          %v475 = vld [vmem:[#allocation8 + $0x718] sm:$0xff]
          %v476 = vld [vmem:[#allocation8 + $0x720] sm:$0xff]
          %v477 = vld [vmem:[#allocation8 + $0x728] sm:$0xff]
          %v478 = vld [vmem:[#allocation8 + $0x730] sm:$0xff]
          %v479 = vld [vmem:[#allocation8 + $0x738] sm:$0xff]
          %v480 = vld [vmem:[#allocation8 + $0x740] sm:$0xff]
          %v481 = vld [vmem:[#allocation8 + $0x748] sm:$0xff]
          %v482 = vld [vmem:[#allocation8 + $0x750] sm:$0xff]
          %v483 = vld [vmem:[#allocation8 + $0x758] sm:$0xff]
          %v484 = vld [vmem:[#allocation8 + $0x760] sm:$0xff]
          %v485 = vld [vmem:[#allocation8 + $0x768] sm:$0xff]
          %v486 = vld [vmem:[#allocation8 + $0x770] sm:$0xff]
          %v487 = vld [vmem:[#allocation8 + $0x778] sm:$0xff]
          %v488 = vld [vmem:[#allocation8 + $0x780] sm:$0xff]
          %v489 = vld [vmem:[#allocation8 + $0x788] sm:$0xff]
          %v490 = vld [vmem:[#allocation8 + $0x790] sm:$0xff]
          %v491 = vld [vmem:[#allocation8 + $0x798] sm:$0xff]
          %v492 = vld [vmem:[#allocation8 + $0x7a0] sm:$0xff]
          %v493 = vld [vmem:[#allocation8 + $0x7a8] sm:$0xff]
          %v494 = vld [vmem:[#allocation8 + $0x7b0] sm:$0xff]
          %v495 = vld [vmem:[#allocation8 + $0x7b8] sm:$0xff]
          %v496 = vld [vmem:[#allocation8 + $0x7c0] sm:$0xff]
          %v497 = vld [vmem:[#allocation8 + $0x7c8] sm:$0xff]
          %v498 = vld [vmem:[#allocation8 + $0x7d0] sm:$0xff]
          %v499 = vld [vmem:[#allocation8 + $0x7d8] sm:$0xff]
          %v500 = vld [vmem:[#allocation8 + $0x7e0] sm:$0xff]
          %v501 = vld [vmem:[#allocation8 + $0x7e8] sm:$0xff]
          %v502 = vld [vmem:[#allocation8 + $0x7f0] sm:$0xff]
          %v503 = vld [vmem:[#allocation8 + $0x7f8] sm:$0xff]
          %504 = vmatpush.msra.mxu0 %v488
          %505 = vmatpush.msra.mxu0 %v472
          %506 = vmatpush.msra.mxu0 %v456
          %507 = vmatpush.msra.mxu0 %v440
          %508 = vmatpush.msra.mxu0 %v424
          %509 = vmatpush.msra.mxu0 %v408
          %510 = vmatpush.msra.mxu0 %v392
          %511 = vmatpush.msra.mxu0 %v376
          %512 = vmatpush.msra.mxu0 %v360
          %513 = vmatpush.msra.mxu0 %v344
          %514 = vmatpush.msra.mxu0 %v328
          %515 = vmatpush.msra.mxu0 %v312
          %516 = vmatpush.msra.mxu0 %v296
          %517 = vmatpush.msra.mxu0 %v280
          %518 = vmatpush.msra.mxu0 %v264
          %519 = vmatpush.msra.mxu0 %v248
          %520 = vmatmul.f32.gmra.mxu0 %v247
          %v521 = vpop.f32.mrf.mxu0
          %v522 = vadd.f32 0.0, %v521
          %523 = vdwg.mxu0
          %524 = vmatpush.msra.mxu0 %v489
          %525 = vmatpush.msra.mxu0 %v473
          %526 = vmatpush.msra.mxu0 %v457
          %527 = vmatpush.msra.mxu0 %v441
          %528 = vmatpush.msra.mxu0 %v425
          %529 = vmatpush.msra.mxu0 %v409
          %530 = vmatpush.msra.mxu0 %v393
          %531 = vmatpush.msra.mxu0 %v377
          %532 = vmatpush.msra.mxu0 %v361
          %533 = vmatpush.msra.mxu0 %v345
          %534 = vmatpush.msra.mxu0 %v329
          %535 = vmatpush.msra.mxu0 %v313
          %536 = vmatpush.msra.mxu0 %v297
          %537 = vmatpush.msra.mxu0 %v281
          %538 = vmatpush.msra.mxu0 %v265
          %539 = vmatpush.msra.mxu0 %v249
          %540 = vmatmul.f32.gmra.mxu0 %v247
          %v541 = vpop.f32.mrf.mxu0
          %v542 = vadd.f32 0.0, %v541
          %543 = vdwg.mxu0
          %544 = vmatpush.msra.mxu0 %v490
          %545 = vmatpush.msra.mxu0 %v474
          %546 = vmatpush.msra.mxu0 %v458
          %547 = vmatpush.msra.mxu0 %v442
          %548 = vmatpush.msra.mxu0 %v426
          %549 = vmatpush.msra.mxu0 %v410
          %550 = vmatpush.msra.mxu0 %v394
          %551 = vmatpush.msra.mxu0 %v378
          %552 = vmatpush.msra.mxu0 %v362
          %553 = vmatpush.msra.mxu0 %v346
          %554 = vmatpush.msra.mxu0 %v330
          %555 = vmatpush.msra.mxu0 %v314
          %556 = vmatpush.msra.mxu0 %v298
          %557 = vmatpush.msra.mxu0 %v282
          %558 = vmatpush.msra.mxu0 %v266
          %559 = vmatpush.msra.mxu0 %v250
          %560 = vmatmul.f32.gmra.mxu0 %v247
          %v561 = vpop.f32.mrf.mxu0
          %v562 = vadd.f32 0.0, %v561
          %563 = vdwg.mxu0
          %564 = vmatpush.msra.mxu0 %v491
          %565 = vmatpush.msra.mxu0 %v475
          %566 = vmatpush.msra.mxu0 %v459
          %567 = vmatpush.msra.mxu0 %v443
          %568 = vmatpush.msra.mxu0 %v427
          %569 = vmatpush.msra.mxu0 %v411
          %570 = vmatpush.msra.mxu0 %v395
          %571 = vmatpush.msra.mxu0 %v379
          %572 = vmatpush.msra.mxu0 %v363
          %573 = vmatpush.msra.mxu0 %v347
          %574 = vmatpush.msra.mxu0 %v331
          %575 = vmatpush.msra.mxu0 %v315
          %576 = vmatpush.msra.mxu0 %v299
          %577 = vmatpush.msra.mxu0 %v283
          %578 = vmatpush.msra.mxu0 %v267
          %579 = vmatpush.msra.mxu0 %v251
          %580 = vmatmul.f32.gmra.mxu0 %v247
          %v581 = vpop.f32.mrf.mxu0
          %v582 = vadd.f32 0.0, %v581
          %583 = vdwg.mxu0
          %584 = vmatpush.msra.mxu0 %v492
          %585 = vmatpush.msra.mxu0 %v476
          %586 = vmatpush.msra.mxu0 %v460
          %587 = vmatpush.msra.mxu0 %v444
          %588 = vmatpush.msra.mxu0 %v428
          %589 = vmatpush.msra.mxu0 %v412
          %590 = vmatpush.msra.mxu0 %v396
          %591 = vmatpush.msra.mxu0 %v380
          %592 = vmatpush.msra.mxu0 %v364
          %593 = vmatpush.msra.mxu0 %v348
          %594 = vmatpush.msra.mxu0 %v332
          %595 = vmatpush.msra.mxu0 %v316
          %596 = vmatpush.msra.mxu0 %v300
          %597 = vmatpush.msra.mxu0 %v284
          %598 = vmatpush.msra.mxu0 %v268
          %599 = vmatpush.msra.mxu0 %v252
          %600 = vmatmul.f32.gmra.mxu0 %v247
          %v601 = vpop.f32.mrf.mxu0
          %v602 = vadd.f32 0.0, %v601
          %603 = vdwg.mxu0
          %604 = vmatpush.msra.mxu0 %v493
          %605 = vmatpush.msra.mxu0 %v477
          %606 = vmatpush.msra.mxu0 %v461
          %607 = vmatpush.msra.mxu0 %v445
          %608 = vmatpush.msra.mxu0 %v429
          %609 = vmatpush.msra.mxu0 %v413
          %610 = vmatpush.msra.mxu0 %v397
          %611 = vmatpush.msra.mxu0 %v381
          %612 = vmatpush.msra.mxu0 %v365
          %613 = vmatpush.msra.mxu0 %v349
          %614 = vmatpush.msra.mxu0 %v333
          %615 = vmatpush.msra.mxu0 %v317
          %616 = vmatpush.msra.mxu0 %v301
          %617 = vmatpush.msra.mxu0 %v285
          %618 = vmatpush.msra.mxu0 %v269
          %619 = vmatpush.msra.mxu0 %v253
          %620 = vmatmul.f32.gmra.mxu0 %v247
          %v621 = vpop.f32.mrf.mxu0
          %v622 = vadd.f32 0.0, %v621
          %623 = vdwg.mxu0
          %624 = vmatpush.msra.mxu0 %v494
          %625 = vmatpush.msra.mxu0 %v478
          %626 = vmatpush.msra.mxu0 %v462
          %627 = vmatpush.msra.mxu0 %v446
          %628 = vmatpush.msra.mxu0 %v430
          %629 = vmatpush.msra.mxu0 %v414
          %630 = vmatpush.msra.mxu0 %v398
          %631 = vmatpush.msra.mxu0 %v382
          %632 = vmatpush.msra.mxu0 %v366
          %633 = vmatpush.msra.mxu0 %v350
          %634 = vmatpush.msra.mxu0 %v334
          %635 = vmatpush.msra.mxu0 %v318
          %636 = vmatpush.msra.mxu0 %v302
          %637 = vmatpush.msra.mxu0 %v286
          %638 = vmatpush.msra.mxu0 %v270
          %639 = vmatpush.msra.mxu0 %v254
          %640 = vmatmul.f32.gmra.mxu0 %v247
          %v641 = vpop.f32.mrf.mxu0
          %v642 = vadd.f32 0.0, %v641
          %643 = vdwg.mxu0
          %644 = vmatpush.msra.mxu0 %v495
          %645 = vmatpush.msra.mxu0 %v479
          %646 = vmatpush.msra.mxu0 %v463
          %647 = vmatpush.msra.mxu0 %v447
          %648 = vmatpush.msra.mxu0 %v431
          %649 = vmatpush.msra.mxu0 %v415
          %650 = vmatpush.msra.mxu0 %v399
          %651 = vmatpush.msra.mxu0 %v383
          %652 = vmatpush.msra.mxu0 %v367
          %653 = vmatpush.msra.mxu0 %v351
          %654 = vmatpush.msra.mxu0 %v335
          %655 = vmatpush.msra.mxu0 %v319
          %656 = vmatpush.msra.mxu0 %v303
          %657 = vmatpush.msra.mxu0 %v287
          %658 = vmatpush.msra.mxu0 %v271
          %659 = vmatpush.msra.mxu0 %v255
          %660 = vmatmul.f32.gmra.mxu0 %v247
          %v661 = vpop.f32.mrf.mxu0
          %v662 = vadd.f32 0.0, %v661
          %663 = vdwg.mxu0
          %664 = vmatpush.msra.mxu0 %v496
          %665 = vmatpush.msra.mxu0 %v480
          %666 = vmatpush.msra.mxu0 %v464
          %667 = vmatpush.msra.mxu0 %v448
          %668 = vmatpush.msra.mxu0 %v432
          %669 = vmatpush.msra.mxu0 %v416
          %670 = vmatpush.msra.mxu0 %v400
          %671 = vmatpush.msra.mxu0 %v384
          %672 = vmatpush.msra.mxu0 %v368
          %673 = vmatpush.msra.mxu0 %v352
          %674 = vmatpush.msra.mxu0 %v336
          %675 = vmatpush.msra.mxu0 %v320
          %676 = vmatpush.msra.mxu0 %v304
          %677 = vmatpush.msra.mxu0 %v288
          %678 = vmatpush.msra.mxu0 %v272
          %679 = vmatpush.msra.mxu0 %v256
          %680 = vmatmul.f32.gmra.mxu0 %v247
          %v681 = vpop.f32.mrf.mxu0
          %v682 = vadd.f32 0.0, %v681
          %683 = vdwg.mxu0
          %684 = vmatpush.msra.mxu0 %v497
          %685 = vmatpush.msra.mxu0 %v481
          %686 = vmatpush.msra.mxu0 %v465
          %687 = vmatpush.msra.mxu0 %v449
          %688 = vmatpush.msra.mxu0 %v433
          %689 = vmatpush.msra.mxu0 %v417
          %690 = vmatpush.msra.mxu0 %v401
          %691 = vmatpush.msra.mxu0 %v385
          %692 = vmatpush.msra.mxu0 %v369
          %693 = vmatpush.msra.mxu0 %v353
          %694 = vmatpush.msra.mxu0 %v337
          %695 = vmatpush.msra.mxu0 %v321
          %696 = vmatpush.msra.mxu0 %v305
          %697 = vmatpush.msra.mxu0 %v289
          %698 = vmatpush.msra.mxu0 %v273
          %699 = vmatpush.msra.mxu0 %v257
          %700 = vmatmul.f32.gmra.mxu0 %v247
          %v701 = vpop.f32.mrf.mxu0
          %v702 = vadd.f32 0.0, %v701
          %703 = vdwg.mxu0
          %704 = vmatpush.msra.mxu0 %v498
          %705 = vmatpush.msra.mxu0 %v482
          %706 = vmatpush.msra.mxu0 %v466
          %707 = vmatpush.msra.mxu0 %v450
          %708 = vmatpush.msra.mxu0 %v434
          %709 = vmatpush.msra.mxu0 %v418
          %710 = vmatpush.msra.mxu0 %v402
          %711 = vmatpush.msra.mxu0 %v386
          %712 = vmatpush.msra.mxu0 %v370
          %713 = vmatpush.msra.mxu0 %v354
          %714 = vmatpush.msra.mxu0 %v338
          %715 = vmatpush.msra.mxu0 %v322
          %716 = vmatpush.msra.mxu0 %v306
          %717 = vmatpush.msra.mxu0 %v290
          %718 = vmatpush.msra.mxu0 %v274
          %719 = vmatpush.msra.mxu0 %v258
          %720 = vmatmul.f32.gmra.mxu0 %v247
          %v721 = vpop.f32.mrf.mxu0
          %v722 = vadd.f32 0.0, %v721
          %723 = vdwg.mxu0
          %724 = vmatpush.msra.mxu0 %v499
          %725 = vmatpush.msra.mxu0 %v483
          %726 = vmatpush.msra.mxu0 %v467
          %727 = vmatpush.msra.mxu0 %v451
          %728 = vmatpush.msra.mxu0 %v435
          %729 = vmatpush.msra.mxu0 %v419
          %730 = vmatpush.msra.mxu0 %v403
          %731 = vmatpush.msra.mxu0 %v387
          %732 = vmatpush.msra.mxu0 %v371
          %733 = vmatpush.msra.mxu0 %v355
          %734 = vmatpush.msra.mxu0 %v339
          %735 = vmatpush.msra.mxu0 %v323
          %736 = vmatpush.msra.mxu0 %v307
          %737 = vmatpush.msra.mxu0 %v291
          %738 = vmatpush.msra.mxu0 %v275
          %739 = vmatpush.msra.mxu0 %v259
          %740 = vmatmul.f32.gmra.mxu0 %v247
          %v741 = vpop.f32.mrf.mxu0
          %v742 = vadd.f32 0.0, %v741
          %743 = vdwg.mxu0
          %744 = vmatpush.msra.mxu0 %v500
          %745 = vmatpush.msra.mxu0 %v484
          %746 = vmatpush.msra.mxu0 %v468
          %747 = vmatpush.msra.mxu0 %v452
          %748 = vmatpush.msra.mxu0 %v436
          %749 = vmatpush.msra.mxu0 %v420
          %750 = vmatpush.msra.mxu0 %v404
          %751 = vmatpush.msra.mxu0 %v388
          %752 = vmatpush.msra.mxu0 %v372
          %753 = vmatpush.msra.mxu0 %v356
          %754 = vmatpush.msra.mxu0 %v340
          %755 = vmatpush.msra.mxu0 %v324
          %756 = vmatpush.msra.mxu0 %v308
          %757 = vmatpush.msra.mxu0 %v292
          %758 = vmatpush.msra.mxu0 %v276
          %759 = vmatpush.msra.mxu0 %v260
          %760 = vmatmul.f32.gmra.mxu0 %v247
          %v761 = vpop.f32.mrf.mxu0
          %v762 = vadd.f32 0.0, %v761
          %763 = vdwg.mxu0
          %764 = vmatpush.msra.mxu0 %v501
          %765 = vmatpush.msra.mxu0 %v485
          %766 = vmatpush.msra.mxu0 %v469
          %767 = vmatpush.msra.mxu0 %v453
          %768 = vmatpush.msra.mxu0 %v437
          %769 = vmatpush.msra.mxu0 %v421
          %770 = vmatpush.msra.mxu0 %v405
          %771 = vmatpush.msra.mxu0 %v389
          %772 = vmatpush.msra.mxu0 %v373
          %773 = vmatpush.msra.mxu0 %v357
          %774 = vmatpush.msra.mxu0 %v341
          %775 = vmatpush.msra.mxu0 %v325
          %776 = vmatpush.msra.mxu0 %v309
          %777 = vmatpush.msra.mxu0 %v293
          %778 = vmatpush.msra.mxu0 %v277
          %779 = vmatpush.msra.mxu0 %v261
          %780 = vmatmul.f32.gmra.mxu0 %v247
          %v781 = vpop.f32.mrf.mxu0
          %v782 = vadd.f32 0.0, %v781
          %783 = vdwg.mxu0
          %784 = vmatpush.msra.mxu0 %v502
          %785 = vmatpush.msra.mxu0 %v486
          %786 = vmatpush.msra.mxu0 %v470
          %787 = vmatpush.msra.mxu0 %v454
          %788 = vmatpush.msra.mxu0 %v438
          %789 = vmatpush.msra.mxu0 %v422
          %790 = vmatpush.msra.mxu0 %v406
          %791 = vmatpush.msra.mxu0 %v390
          %792 = vmatpush.msra.mxu0 %v374
          %793 = vmatpush.msra.mxu0 %v358
          %794 = vmatpush.msra.mxu0 %v342
          %795 = vmatpush.msra.mxu0 %v326
          %796 = vmatpush.msra.mxu0 %v310
          %797 = vmatpush.msra.mxu0 %v294
          %798 = vmatpush.msra.mxu0 %v278
          %799 = vmatpush.msra.mxu0 %v262
          %800 = vmatmul.f32.gmra.mxu0 %v247
          %v801 = vpop.f32.mrf.mxu0
          %v802 = vadd.f32 0.0, %v801
          %803 = vdwg.mxu0
          %804 = vmatpush.msra.mxu0 %v503
          %805 = vmatpush.msra.mxu0 %v487
          %806 = vmatpush.msra.mxu0 %v471
          %807 = vmatpush.msra.mxu0 %v455
          %808 = vmatpush.msra.mxu0 %v439
          %809 = vmatpush.msra.mxu0 %v423
          %810 = vmatpush.msra.mxu0 %v407
          %811 = vmatpush.msra.mxu0 %v391
          %812 = vmatpush.msra.mxu0 %v375
          %813 = vmatpush.msra.mxu0 %v359
          %814 = vmatpush.msra.mxu0 %v343
          %815 = vmatpush.msra.mxu0 %v327
          %816 = vmatpush.msra.mxu0 %v311
          %817 = vmatpush.msra.mxu0 %v295
          %818 = vmatpush.msra.mxu0 %v279
          %819 = vmatpush.msra.mxu0 %v263
          %820 = vmatmul.f32.gmra.mxu0 %v247
          %v821 = vpop.f32.mrf.mxu0
          %v822 = vadd.f32 0.0, %v821
          %823 = vdwg.mxu0
          %v840 = vrot.slane %v542, 7
          %v841 = vrot.slane %v562, 6
          %v842 = vrot.slane %v582, 5
          %v843 = vrot.slane %v602, 4
          %v844 = vrot.slane %v622, 3
          %v845 = vrot.slane %v642, 2
          %v846 = vrot.slane %v662, 1
          %v847 = vrot.slane %v702, 7
          %v848 = vrot.slane %v722, 6
          %v849 = vrot.slane %v742, 5
          %v850 = vrot.slane %v762, 4
          %v851 = vrot.slane %v782, 3
          %v852 = vrot.slane %v802, 2
          %v853 = vrot.slane %v822, 1
          %vm854 = vcmask 1040384
          %v855 = vsel %vm854, %v522, %v840
          %vm856 = vcmask 1042434
          %v857 = vsel %vm856, %v841, %v842
          %vm858 = vcmask 1041408
          %v859 = vsel %vm858, %v855, %v857
          %vm860 = vcmask 1044484
          %v861 = vsel %vm860, %v843, %v844
          %vm862 = vcmask 1046534
          %v863 = vsel %vm862, %v845, %v846
          %vm864 = vcmask 1045508
          %v865 = vsel %vm864, %v861, %v863
          %vm866 = vcmask 1043456
          %v867 = vsel %vm866, %v859, %v865
          %v868 = vsel %vm854, %v682, %v847
          %v869 = vsel %vm856, %v848, %v849
          %v870 = vsel %vm858, %v868, %v869
          %v871 = vsel %vm860, %v850, %v851
          %v872 = vsel %vm862, %v852, %v853
          %v873 = vsel %vm864, %v871, %v872
          %v874 = vsel %vm866, %v870, %v873
          %vm875 = vcmask 1041409
          %v876 = vsel %vm875, %v522, %v840
          %vm877 = vcmask 1043459
          %v878 = vsel %vm877, %v841, %v842
          %vm879 = vcmask 1042433
          %v880 = vsel %vm879, %v876, %v878
          %vm881 = vcmask 1045509
          %v882 = vsel %vm881, %v843, %v844
          %vm883 = vcmask 1046528
          %v884 = vsel %vm883, %v846, %v845
          %vm885 = vcmask 1046533
          %v886 = vsel %vm885, %v882, %v884
          %vm887 = vcmask 1044481
          %v888 = vsel %vm887, %v880, %v886
          %v889 = vrot.slane %v888, 1
          %v890 = vsel %vm875, %v682, %v847
          %v891 = vsel %vm877, %v848, %v849
          %v892 = vsel %vm879, %v890, %v891
          %v893 = vsel %vm881, %v850, %v851
          %v894 = vsel %vm883, %v853, %v852
          %v895 = vsel %vm885, %v893, %v894
          %v896 = vsel %vm887, %v892, %v895
          %v897 = vrot.slane %v896, 1
          %v898 = vsel %vm856, %v522, %v840
          %v899 = vsel %vm860, %v841, %v842
          %vm900 = vcmask 1043458
          %v901 = vsel %vm900, %v898, %v899
          %v902 = vsel %vm862, %v843, %v844
          %v903 = vsel %vm854, %v845, %v846
          %vm904 = vcmask 1045504
          %v905 = vsel %vm904, %v903, %v902
          %vm906 = vcmask 1045506
          %v907 = vsel %vm906, %v901, %v905
          %v908 = vrot.slane %v907, 2
          %v909 = vsel %vm856, %v682, %v847
          %v910 = vsel %vm860, %v848, %v849
          %v911 = vsel %vm900, %v909, %v910
          %v912 = vsel %vm862, %v850, %v851
          %v913 = vsel %vm854, %v852, %v853
          %v914 = vsel %vm904, %v913, %v912
          %v915 = vsel %vm906, %v911, %v914
          %v916 = vrot.slane %v915, 2
          %v917 = vsel %vm877, %v522, %v840
          %v918 = vsel %vm881, %v841, %v842
          %vm919 = vcmask 1044483
          %v920 = vsel %vm919, %v917, %v918
          %v921 = vsel %vm883, %v844, %v843
          %v922 = vsel %vm875, %v845, %v846
          %vm923 = vcmask 1046529
          %v924 = vsel %vm923, %v922, %v921
          %vm925 = vcmask 1046531
          %v926 = vsel %vm925, %v920, %v924
          %v927 = vrot.slane %v926, 3
          %v928 = vsel %vm877, %v682, %v847
          %v929 = vsel %vm881, %v848, %v849
          %v930 = vsel %vm919, %v928, %v929
          %v931 = vsel %vm883, %v851, %v850
          %v932 = vsel %vm875, %v852, %v853
          %v933 = vsel %vm923, %v932, %v931
          %v934 = vsel %vm925, %v930, %v933
          %v935 = vrot.slane %v934, 3
          %v936 = vsel %vm860, %v522, %v840
          %v937 = vsel %vm862, %v841, %v842
          %v938 = vsel %vm864, %v936, %v937
          %v939 = vsel %vm854, %v843, %v844
          %v940 = vsel %vm856, %v845, %v846
          %v941 = vsel %vm858, %v939, %v940
          %v942 = vsel %vm866, %v941, %v938
          %v943 = vrot.slane %v942, 4
          %v944 = vsel %vm860, %v682, %v847
          %v945 = vsel %vm862, %v848, %v849
          %v946 = vsel %vm864, %v944, %v945
          %v947 = vsel %vm854, %v850, %v851
          %v948 = vsel %vm856, %v852, %v853
          %v949 = vsel %vm858, %v947, %v948
          %v950 = vsel %vm866, %v949, %v946
          %v951 = vrot.slane %v950, 4
          %v952 = vsel %vm881, %v522, %v840
          %v953 = vsel %vm883, %v842, %v841
          %v954 = vsel %vm885, %v952, %v953
          %v955 = vsel %vm875, %v843, %v844
          %v956 = vsel %vm877, %v845, %v846
          %v957 = vsel %vm879, %v955, %v956
          %v958 = vsel %vm887, %v957, %v954
          %v959 = vrot.slane %v958, 5
          %v960 = vsel %vm881, %v682, %v847
          %v961 = vsel %vm883, %v849, %v848
          %v962 = vsel %vm885, %v960, %v961
          %v963 = vsel %vm875, %v850, %v851
          %v964 = vsel %vm877, %v852, %v853
          %v965 = vsel %vm879, %v963, %v964
          %v966 = vsel %vm887, %v965, %v962
          %v967 = vrot.slane %v966, 5
          %v968 = vsel %vm862, %v522, %v840
          %v969 = vsel %vm854, %v841, %v842
          %v970 = vsel %vm904, %v969, %v968
          %v971 = vsel %vm856, %v843, %v844
          %v972 = vsel %vm860, %v845, %v846
          %v973 = vsel %vm900, %v971, %v972
          %v974 = vsel %vm906, %v973, %v970
          %v975 = vrot.slane %v974, 6
          %v976 = vsel %vm862, %v682, %v847
          %v977 = vsel %vm854, %v848, %v849
          %v978 = vsel %vm904, %v977, %v976
          %v979 = vsel %vm856, %v850, %v851
          %v980 = vsel %vm860, %v852, %v853
          %v981 = vsel %vm900, %v979, %v980
          %v982 = vsel %vm906, %v981, %v978
          %v983 = vrot.slane %v982, 6
          %v984 = vsel %vm883, %v840, %v522
          %v985 = vsel %vm875, %v841, %v842
          %v986 = vsel %vm923, %v985, %v984
          %v987 = vsel %vm877, %v843, %v844
          %v988 = vsel %vm881, %v845, %v846
          %v989 = vsel %vm919, %v987, %v988
          %v990 = vsel %vm925, %v989, %v986
          %v991 = vrot.slane %v990, 7
          %v992 = vsel %vm883, %v847, %v682
          %v993 = vsel %vm875, %v848, %v849
          %v994 = vsel %vm923, %v993, %v992
          %v995 = vsel %vm877, %v850, %v851
          %v996 = vsel %vm881, %v852, %v853
          %v997 = vsel %vm919, %v995, %v996
          %v998 = vsel %vm925, %v997, %v994
          %v999 = vrot.slane %v998, 7
          %1016 = vst [vmem:[#allocation2] sm:$0xff] %v867
          %1017 = vst [vmem:[#allocation2 + $0x8] sm:$0xff] %v874
          %1018 = vst [vmem:[#allocation2 + $0x10] sm:$0xff] %v889
          %1019 = vst [vmem:[#allocation2 + $0x18] sm:$0xff] %v897
          %1020 = vst [vmem:[#allocation2 + $0x20] sm:$0xff] %v908
          %1021 = vst [vmem:[#allocation2 + $0x28] sm:$0xff] %v916
          %1022 = vst [vmem:[#allocation2 + $0x30] sm:$0xff] %v927
          %1023 = vst [vmem:[#allocation2 + $0x38] sm:$0xff] %v935
          %1024 = vst [vmem:[#allocation2 + $0x40] sm:$0xff] %v943
          %1025 = vst [vmem:[#allocation2 + $0x48] sm:$0xff] %v951
          %1026 = vst [vmem:[#allocation2 + $0x50] sm:$0xff] %v959
          %1027 = vst [vmem:[#allocation2 + $0x58] sm:$0xff] %v967
          %1028 = vst [vmem:[#allocation2 + $0x60] sm:$0xff] %v975
          %1029 = vst [vmem:[#allocation2 + $0x68] sm:$0xff] %v983
          %1030 = vst [vmem:[#allocation2 + $0x70] sm:$0xff] %v991
          %1031 = vst [vmem:[#allocation2 + $0x78] sm:$0xff] %v999
        $region48: #{tpu_custom_call.1} parent=31 // pred_fallthru
          _
        %v1032 = vld [vmem:[%s209] sm:$0xff]
        %v1033 = vld [vmem:[#allocation2] sm:$0xff]
        %v1034 = vld [vmem:[#allocation2 + $0x8] sm:$0xff]
        %v1035 = vld [vmem:[#allocation2 + $0x10] sm:$0xff]
        %v1036 = vld [vmem:[#allocation2 + $0x18] sm:$0xff]
        %v1037 = vld [vmem:[#allocation2 + $0x20] sm:$0xff]
        %v1038 = vld [vmem:[#allocation2 + $0x28] sm:$0xff]
        %v1039 = vld [vmem:[#allocation2 + $0x30] sm:$0xff]
        %v1040 = vld [vmem:[#allocation2 + $0x38] sm:$0xff]
        %v1041 = vld [vmem:[#allocation2 + $0x40] sm:$0xff]
        %v1042 = vld [vmem:[#allocation2 + $0x48] sm:$0xff]
        %v1043 = vld [vmem:[#allocation2 + $0x50] sm:$0xff]
        %v1044 = vld [vmem:[#allocation2 + $0x58] sm:$0xff]
        %v1045 = vld [vmem:[#allocation2 + $0x60] sm:$0xff]
        %v1046 = vld [vmem:[#allocation2 + $0x68] sm:$0xff]
        %v1047 = vld [vmem:[#allocation2 + $0x70] sm:$0xff]
        %v1048 = vld [vmem:[#allocation2 + $0x78] sm:$0xff]
        %1049 = vmatpush.xpose.msra.mxu0 %v1048
        %1050 = vmatpush.xpose.msra.mxu0 %v1047
        %1051 = vmatpush.xpose.msra.mxu0 %v1046
        %1052 = vmatpush.xpose.msra.mxu0 %v1045
        %1053 = vmatpush.xpose.msra.mxu0 %v1044
        %1054 = vmatpush.xpose.msra.mxu0 %v1043
        %1055 = vmatpush.xpose.msra.mxu0 %v1042
        %1056 = vmatpush.xpose.msra.mxu0 %v1041
        %1057 = vmatpush.xpose.msra.mxu0 %v1040
        %1058 = vmatpush.xpose.msra.mxu0 %v1039
        %1059 = vmatpush.xpose.msra.mxu0 %v1038
        %1060 = vmatpush.xpose.msra.mxu0 %v1037
        %1061 = vmatpush.xpose.msra.mxu0 %v1036
        %1062 = vmatpush.xpose.msra.mxu0 %v1035
        %1063 = vmatpush.xpose.msra.mxu0 %v1034
        %1064 = vmatpush.xpose.msra.mxu0 %v1033
        %1065 = vmatmul.f32.gmra.mxu0 %v1032
        %v1066 = vpop.f32.mrf.mxu0
        %v1067 = vadd.f32 0.0, %v1066
        %1068 = vdwg.mxu0
        %1069 = vst [vmem:[%s242] sm:$0xff] %v1067
        %s1070 = sand.u32 %s118, 1
        %s1071 = scalar_lea.sflag [#allocation5], %s1070
        %s1072 = sand.u32 %s118, 1
        %s1073 = smul.addr %s1072, 8
        %s1074 = scalar_lea.vmem [#allocation9], %s1073
        // Predicated region
        $region49: #{tpu_custom_call.1} parent=31 // pred_check
          %p1075 = pneg %p128
        $region50: #{tpu_custom_call.1} parent=31 // pred_check_branch
          %1077 = sbr.rel (%p1075) target = $region52
        $region51: #{tpu_custom_call.1} parent=31 // pred_region
          %1079 = vsyncadd %s1071, 0
          %s1080 = sadd.s32 %s26, %s25
          %s1081 = smul.addr %s1080, 8
          %s1082 = scalar_lea.hbm %s3, %s1081
          %s1084 = sshll.u32 %s1074, 4
          %s1085 = int_to_ptr.vmem [resolvable:$true] %s1084
          %s1086 = sshll.u32 %s1082, 4
          %s1087 = int_to_ptr.hbm [resolvable:$true] %s1086
          %1089 = dma.vmem_to_hbm [thread:$0]  %s1085, 128, %s1087, %s1071
        $region52: #{tpu_custom_call.1} parent=31 // pred_fallthru
          _
      $region32: #{tpu_custom_call.1} parent=5 // pred_fallthru
        _
      %p1090 = scmp.le.s32.totalorder 2, %s16
      // Predicated region
      $region53: #{tpu_custom_call.1} parent=5 // pred_check
        %p1091 = pneg %p1090
      $region54: #{tpu_custom_call.1} parent=5 // pred_check_branch
        %1093 = sbr.rel (%p1091) target = $region56
      $region55: #{tpu_custom_call.1} parent=5 // pred_region
        %s1094 = ssub.s32 %s16, 2
        // Predicated region
        $region57: #{tpu_custom_call.1} parent=55 // pred_check
          %p1095 = pneg %p134
        $region58: #{tpu_custom_call.1} parent=55 // pred_check_branch
          %1097 = sbr.rel (%p1095) target = $region60
        $region59: #{tpu_custom_call.1} parent=55 // pred_region
          %s1098 = sand.u32 %s119, 1
          %s1099 = scalar_lea.sflag [#allocation5], %s1098
          %s1100 = sand.u32 %s119, 1
          %s1101 = smul.addr %s1100, 8
          %s1102 = scalar_lea.vmem [#allocation9], %s1101
          %1104 = dma.done %s1099, 128
        $region60: #{tpu_custom_call.1} parent=55 // pred_fallthru
          _
      $region56: #{tpu_custom_call.1} parent=5 // pred_fallthru
        _
    $region6: #{tpu_custom_call.1} parent=1 // loop_footer
      %s20 = sadd.s32 1, %s16
    $region7: #{tpu_custom_call.1} parent=1 // loop_footer_branch
      %15 = sbr.rel target = $region3
    $region8: #{tpu_custom_call.1} parent=1 // loop_exit
      _
    %1105 = vsyncpa [#allocation4], 1
    %s1106 = scalar_lea.sflag [#allocation4], 1
    %1107 = vsyncpa %s1106, 1
    %1108 = vsyncpa [#allocation7], 1
    %1109 = vsyncpa [#allocation5], 1
    %s1110 = scalar_lea.sflag [#allocation5], 1
    %1111 = vsyncpa %s1110, 1

// kernel: tpu_custom_call.1
$region0: #{tpu_custom_call.1}
  #allocation0 [shape = 'u32[]', space=smem, size = 0x4, offset = 0x4, fixed_abs, tag = 'smem constant byte address 0x4 - core index']
  #allocation1 [shape = 'u32[72,128]{1,0:T(1,128)}', space=vmem, size = 0x9000, scoped, tag = 'internal scratch']
  %s0 = inlined_call_operand.hbm [shape: f32[2,8,128], index: 0, kind: input, shape index: {}]
  %s1 = inlined_call_operand.hbm [shape: f32[2,128,128], index: 1, kind: input, shape index: {}]
  %s2 = inlined_call_operand.hbm [shape: f32[2,8,128], index: 2, kind: output, shape index: {}]
  %s3 = sld [smem:[#allocation0]]
  $region49: #{tpu_custom_call.1} parent=0
    _
  %s5 = ssub.s32 1, %s3
  %s6 = scalar_select 0, %s5, %s3
  $region1: #{tpu_custom_call.1} parent=0
    #allocation2 [shape = 'u8[8192]{0}', space=vmem, size = 0x2000, scoped, tag = 'input window, operand 0']
    #allocation3 [shape = 's32[2]{0}', space=sflag, size = 0x8, scoped, tag = 'scoped memory for tpu_custom_call.1']
    #allocation4 [shape = 's32[2]{0}', space=sflag, size = 0x8, scoped, tag = 'scoped memory for tpu_custom_call.1']
    #allocation5 [shape = 'u8[65536]{0}', space=vmem, size = 0x10000, scoped, tag = 'input window, operand 1, single buffered']
    #allocation6 [shape = 's32[1]{0}', space=sflag, size = 0x4, scoped, tag = 'scoped memory for tpu_custom_call.1']
    #allocation7 [shape = 'u8[8192]{0}', space=vmem, size = 0x2000, scoped, tag = 'output window, operand 0']
    %7 = vsyncpa [#allocation3], 0
    %s8 = scalar_lea.sflag [#allocation3], 1
    %9 = vsyncpa %s8, 0
    %10 = vsyncpa [#allocation6], 0
    %11 = vsyncpa [#allocation4], 0
    %s12 = scalar_lea.sflag [#allocation4], 1
    %13 = vsyncpa %s12, 0
    loop: start=0, step=1, limit=4
    $region2: #{tpu_custom_call.1} parent=1 // loop_pre_header
      _
    $region3: #{tpu_custom_call.1} parent=1 // loop_header
      %s15 = sphi 0, %s19
      %p16 = scmp.ge.s32.totalorder %s15, 4
      %s22 = sphi 0, %s34
      %s23 = sphi 0, %s30
      %s24 = sphi 0, %s22
      %s25 = sphi 0, %s23
      %s26 = sphi 0, %s24
      %s27 = sphi 0, %s25
      %s39 = sphi 0, %s41
      %s42 = sphi 0, %s39
      %s43 = sphi 0, %s42
      %s59 = sphi 0, %s43
      %s65 = sphi 0, %s67
      %s68 = sphi 0, %s65
      %s69 = sphi 0, %s68
      %s85 = sphi 0, %s69
      %s93 = sphi 0, %s95
      %s96 = sphi 0, %s93
      %s97 = sphi 0, %s96
      %s113 = sphi 0, %s97
    $region4: #{tpu_custom_call.1} parent=1 // loop_header_branch
      %18 = sbr.rel (%p16) target = $region8
    $region5: #{tpu_custom_call.1} parent=1 // loop_body
      %s20 = ssub.s32 %s15, 1
      %s21 = ssub.s32 %s15, 2
      %s28 = sadd.s32 1, %s23
      %p29 = scmp.ge.s32.totalorder %s28, 1
      %s30 = scalar_select %p29, 0, %s28
      %s31 = sadd.s32 1, %s22
      %s32 = scalar_select %p29, %s31, %s22
      %p33 = scmp.ge.s32.totalorder %s32, 2
      %s34 = scalar_select %p33, 0, %s32
      %s35 = ssub.s32 %s22, %s34
      %s36 = ssub.s32 %s23, %s30
      %s37 = sor.u32 %s35, %s36
      %p38 = scmp.eq.s32.totalorder %s37, 0
      %s40 = sadd.s32 %s39, 1
      %s41 = scalar_select %p38, %s39, %s40
      %p44 = pneg %p38
      %p45 = scmp.eq.s32.totalorder %s15, 1
      %p46 = por %p44, %p45
      %p47 = scmp.ne.s32.totalorder %s39, %s42
      %p48 = scmp.eq.s32.totalorder %s15, 0
      %p49 = por %p47, %p48
      %p50 = scmp.ne.s32.totalorder %s39, %s42
      %p51 = scmp.eq.s32.totalorder %s20, 1
      %p52 = por %p50, %p51
      %p53 = scmp.ne.s32.totalorder %s42, %s43
      %p54 = scmp.eq.s32.totalorder %s20, 0
      %p55 = por %p53, %p54
      %p56 = scmp.ne.s32.totalorder %s42, %s43
      %p57 = scmp.eq.s32.totalorder %s21, 1
      %p58 = por %p56, %p57
      %p60 = scmp.ne.s32.totalorder %s43, %s59
      %p61 = scmp.eq.s32.totalorder %s21, 0
      %p62 = por %p60, %p61
      %s63 = ssub.s32 %s22, %s34
      %p64 = scmp.eq.s32.totalorder %s63, 0
      %s66 = sadd.s32 %s65, 1
      %s67 = scalar_select %p64, %s65, %s66
      %p70 = pneg %p64
      %p71 = scmp.eq.s32.totalorder %s15, 1
      %p72 = por %p70, %p71
      %p73 = scmp.ne.s32.totalorder %s65, %s68
      %p74 = scmp.eq.s32.totalorder %s15, 0
      %p75 = por %p73, %p74
      %p76 = scmp.ne.s32.totalorder %s65, %s68
      %p77 = scmp.eq.s32.totalorder %s20, 1
      %p78 = por %p76, %p77
      %p79 = scmp.ne.s32.totalorder %s68, %s69
      %p80 = scmp.eq.s32.totalorder %s20, 0
      %p81 = por %p79, %p80
      %p82 = scmp.ne.s32.totalorder %s68, %s69
      %p83 = scmp.eq.s32.totalorder %s21, 1
      %p84 = por %p82, %p83
      %p86 = scmp.ne.s32.totalorder %s69, %s85
      %p87 = scmp.eq.s32.totalorder %s21, 0
      %p88 = por %p86, %p87
      %s89 = ssub.s32 %s22, %s34
      %s90 = ssub.s32 %s23, %s30
      %s91 = sor.u32 %s89, %s90
      %p92 = scmp.eq.s32.totalorder %s91, 0
      %s94 = sadd.s32 %s93, 1
      %s95 = scalar_select %p92, %s93, %s94
      %p98 = pneg %p92
      %p99 = scmp.eq.s32.totalorder %s15, 1
      %p100 = por %p98, %p99
      %p101 = scmp.ne.s32.totalorder %s93, %s96
      %p102 = scmp.eq.s32.totalorder %s15, 0
      %p103 = por %p101, %p102
      %p104 = scmp.ne.s32.totalorder %s93, %s96
      %p105 = scmp.eq.s32.totalorder %s20, 1
      %p106 = por %p104, %p105
      %p107 = scmp.ne.s32.totalorder %s96, %s97
      %p108 = scmp.eq.s32.totalorder %s20, 0
      %p109 = por %p107, %p108
      %p110 = scmp.ne.s32.totalorder %s96, %s97
      %p111 = scmp.eq.s32.totalorder %s21, 1
      %p112 = por %p110, %p111
      %p114 = scmp.ne.s32.totalorder %s97, %s113
      %p115 = scmp.eq.s32.totalorder %s21, 0
      %p116 = por %p114, %p115
      %p117 = scmp.le.s32.totalorder 1, %s15
      %p118 = scmp.lt.s32.totalorder %s15, 3
      %p119 = pnand %p117, %p118
      %p120 = pneg %p119
      // Predicated region
      $region9: #{tpu_custom_call.1} parent=5 // pred_check
        _
      $region10: #{tpu_custom_call.1} parent=5 // pred_check_branch
        %122 = sbr.rel (%p119) target = $region12
      $region11: #{tpu_custom_call.1} parent=5 // pred_region
        %s123 = ssub.s32 %s15, 1
        // Predicated region
        $region13: #{tpu_custom_call.1} parent=11 // pred_check
          %p124 = pneg %p81
        $region14: #{tpu_custom_call.1} parent=11 // pred_check_branch
          %126 = sbr.rel (%p124) target = $region16
        $region15: #{tpu_custom_call.1} parent=11 // pred_region
          %128 = vsyncadd [#allocation6], 0
          %s129 = smul.addr %s24, 16
          %s130 = smul.addr %s129, 8
          %s131 = scalar_lea.hbm %s1, %s130
          %s132 = sshll.u32 %s131, 4
          %s133 = int_to_ptr.hbm [resolvable:$true] %s132
          %s134 = sshll.u32 [#allocation5], 4
          %s135 = int_to_ptr.vmem [resolvable:$true] %s134
          %140 = dma.hbm_to_vmem [thread:$0]  %s133, 2048, %s135, [#allocation6], 128, 128, 8
        $region16: #{tpu_custom_call.1} parent=11 // pred_fallthru
          _
      $region12: #{tpu_custom_call.1} parent=5 // pred_fallthru
        _
      %p141 = scmp.lt.s32.totalorder %s15, 2
      // Predicated region
      $region17: #{tpu_custom_call.1} parent=5 // pred_check
        %p142 = pneg %p141
      $region18: #{tpu_custom_call.1} parent=5 // pred_check_branch
        %144 = sbr.rel (%p142) target = $region20
      $region19: #{tpu_custom_call.1} parent=5 // pred_region
        // Predicated region
        $region21: #{tpu_custom_call.1} parent=19 // pred_check
          %p145 = pneg %p49
        $region22: #{tpu_custom_call.1} parent=19 // pred_check_branch
          %147 = sbr.rel (%p145) target = $region24
        $region23: #{tpu_custom_call.1} parent=19 // pred_region
          %s148 = sand.u32 %s39, 1
          %s149 = scalar_lea.sflag [#allocation3], %s148
          %s150 = sand.u32 %s39, 1
          %s151 = smul.addr %s150, 8
          %s152 = scalar_lea.vmem [#allocation2], %s151
          %154 = vsyncadd %s149, 0
          %s155 = sadd.s32 %s23, %s22
          %s156 = smul.addr %s155, 8
          %s157 = scalar_lea.hbm %s0, %s156
          %s159 = sshll.u32 %s157, 4
          %s160 = int_to_ptr.hbm [resolvable:$true] %s159
          %s161 = sshll.u32 %s152, 4
          %s162 = int_to_ptr.vmem [resolvable:$true] %s161
          %164 = dma.hbm_to_vmem [thread:$0]  %s160, 128, %s162, %s149
        $region24: #{tpu_custom_call.1} parent=19 // pred_fallthru
          _
      $region20: #{tpu_custom_call.1} parent=5 // pred_fallthru
        _
      %p165 = scmp.le.s32.totalorder 1, %s15
      %p166 = scmp.lt.s32.totalorder %s15, 3
      %p167 = pnand %p165, %p166
      %p168 = pneg %p167
      // Predicated region
      $region25: #{tpu_custom_call.1} parent=5 // pred_check
        _
      $region26: #{tpu_custom_call.1} parent=5 // pred_check_branch
        %170 = sbr.rel (%p167) target = $region28
      $region27: #{tpu_custom_call.1} parent=5 // pred_region
        %s171 = ssub.s32 %s15, 1
        %s172 = sand.u32 %s42, 1
        %s173 = scalar_lea.sflag [#allocation3], %s172
        %s174 = sand.u32 %s42, 1
        %s175 = smul.addr %s174, 8
        %s176 = scalar_lea.vmem [#allocation2], %s175
        // Predicated region
        $region29: #{tpu_custom_call.1} parent=27 // pred_check
          %p177 = pneg %p55
        $region30: #{tpu_custom_call.1} parent=27 // pred_check_branch
          %179 = sbr.rel (%p177) target = $region32
        $region31: #{tpu_custom_call.1} parent=27 // pred_region
          %181 = dma.done %s173, 128
        $region32: #{tpu_custom_call.1} parent=27 // pred_fallthru
          _
        // Predicated region
        $region33: #{tpu_custom_call.1} parent=27 // pred_check
          %p182 = pneg %p81
        $region34: #{tpu_custom_call.1} parent=27 // pred_check_branch
          %184 = sbr.rel (%p182) target = $region36
        $region35: #{tpu_custom_call.1} parent=27 // pred_region
          %186 = dma.done [#allocation6], 2048
        $region36: #{tpu_custom_call.1} parent=27 // pred_fallthru
          _
        %s187 = sand.u32 %s42, 1
        %s188 = scalar_lea.sflag [#allocation3], %s187
        %s189 = sand.u32 %s42, 1
        %s190 = smul.addr %s189, 8
        %s191 = scalar_lea.vmem [#allocation2], %s190
        %p192 = pneg %p55
        %p193 = pneg %p52
        %p194 = pneg %p81
        %p195 = pneg %p78
        %p196 = pneg %p109
        %p197 = pneg %p106
        %s198 = sand.u32 %s96, 1
        %s199 = scalar_lea.sflag [#allocation4], %s198
        %s200 = sand.u32 %s96, 1
        %s201 = smul.addr %s200, 8
        %s202 = scalar_lea.vmem [#allocation7], %s201
        %v203 = vld [vmem:[%s176] sm:$0xff]
        %v204 = vld [vmem:[#allocation5] sm:$0xff]
        %v205 = vld [vmem:[#allocation5 + $0x8] sm:$0xff]
        %v206 = vld [vmem:[#allocation5 + $0x10] sm:$0xff]
        %v207 = vld [vmem:[#allocation5 + $0x18] sm:$0xff]
        %v208 = vld [vmem:[#allocation5 + $0x20] sm:$0xff]
        %v209 = vld [vmem:[#allocation5 + $0x28] sm:$0xff]
        %v210 = vld [vmem:[#allocation5 + $0x30] sm:$0xff]
        %v211 = vld [vmem:[#allocation5 + $0x38] sm:$0xff]
        %v212 = vld [vmem:[#allocation5 + $0x40] sm:$0xff]
        %v213 = vld [vmem:[#allocation5 + $0x48] sm:$0xff]
        %v214 = vld [vmem:[#allocation5 + $0x50] sm:$0xff]
        %v215 = vld [vmem:[#allocation5 + $0x58] sm:$0xff]
        %v216 = vld [vmem:[#allocation5 + $0x60] sm:$0xff]
        %v217 = vld [vmem:[#allocation5 + $0x68] sm:$0xff]
        %v218 = vld [vmem:[#allocation5 + $0x70] sm:$0xff]
        %v219 = vld [vmem:[#allocation5 + $0x78] sm:$0xff]
        %220 = vmatpush.xpose.msra.mxu0 %v219
        %221 = vmatpush.xpose.msra.mxu0 %v218
        %222 = vmatpush.xpose.msra.mxu0 %v217
        %223 = vmatpush.xpose.msra.mxu0 %v216
        %224 = vmatpush.xpose.msra.mxu0 %v215
        %225 = vmatpush.xpose.msra.mxu0 %v214
        %226 = vmatpush.xpose.msra.mxu0 %v213
        %227 = vmatpush.xpose.msra.mxu0 %v212
        %228 = vmatpush.xpose.msra.mxu0 %v211
        %229 = vmatpush.xpose.msra.mxu0 %v210
        %230 = vmatpush.xpose.msra.mxu0 %v209
        %231 = vmatpush.xpose.msra.mxu0 %v208
        %232 = vmatpush.xpose.msra.mxu0 %v207
        %233 = vmatpush.xpose.msra.mxu0 %v206
        %234 = vmatpush.xpose.msra.mxu0 %v205
        %235 = vmatpush.xpose.msra.mxu0 %v204
        %236 = vmatmul.f32.gmra.mxu0 %v203
        %v237 = vpop.f32.mrf.mxu0
        %v238 = vadd.f32 0.0, %v237
        %239 = vdwg.mxu0
        %240 = vst [vmem:[%s202] sm:$0xff] %v238
        %s241 = sand.u32 %s96, 1
        %s242 = scalar_lea.sflag [#allocation4], %s241
        %s243 = sand.u32 %s96, 1
        %s244 = smul.addr %s243, 8
        %s245 = scalar_lea.vmem [#allocation7], %s244
        // Predicated region
        $region37: #{tpu_custom_call.1} parent=27 // pred_check
          %p246 = pneg %p106
        $region38: #{tpu_custom_call.1} parent=27 // pred_check_branch
          %248 = sbr.rel (%p246) target = $region40
        $region39: #{tpu_custom_call.1} parent=27 // pred_region
          %250 = vsyncadd %s242, 0
          %s251 = sadd.s32 %s25, %s24
          %s252 = smul.addr %s251, 8
          %s253 = scalar_lea.hbm %s2, %s252
          %s255 = sshll.u32 %s245, 4
          %s256 = int_to_ptr.vmem [resolvable:$true] %s255
          %s257 = sshll.u32 %s253, 4
          %s258 = int_to_ptr.hbm [resolvable:$true] %s257
          %260 = dma.vmem_to_hbm [thread:$0]  %s256, 128, %s258, %s242
        $region40: #{tpu_custom_call.1} parent=27 // pred_fallthru
          _
      $region28: #{tpu_custom_call.1} parent=5 // pred_fallthru
        _
      %p261 = scmp.le.s32.totalorder 2, %s15
      // Predicated region
      $region41: #{tpu_custom_call.1} parent=5 // pred_check
        %p262 = pneg %p261
      $region42: #{tpu_custom_call.1} parent=5 // pred_check_branch
        %264 = sbr.rel (%p262) target = $region44
      $region43: #{tpu_custom_call.1} parent=5 // pred_region
        %s265 = ssub.s32 %s15, 2
        // Predicated region
        $region45: #{tpu_custom_call.1} parent=43 // pred_check
          %p266 = pneg %p112
        $region46: #{tpu_custom_call.1} parent=43 // pred_check_branch
          %268 = sbr.rel (%p266) target = $region48
        $region47: #{tpu_custom_call.1} parent=43 // pred_region
          %s269 = sand.u32 %s97, 1
          %s270 = scalar_lea.sflag [#allocation4], %s269
          %s271 = sand.u32 %s97, 1
          %s272 = smul.addr %s271, 8
          %s273 = scalar_lea.vmem [#allocation7], %s272
          %275 = dma.done %s270, 128
        $region48: #{tpu_custom_call.1} parent=43 // pred_fallthru
          _
      $region44: #{tpu_custom_call.1} parent=5 // pred_fallthru
        _
    $region6: #{tpu_custom_call.1} parent=1 // loop_footer
      %s19 = sadd.s32 1, %s15
    $region7: #{tpu_custom_call.1} parent=1 // loop_footer_branch
      %14 = sbr.rel target = $region3
    $region8: #{tpu_custom_call.1} parent=1 // loop_exit
      _
    %276 = vsyncpa [#allocation3], 1
    %s277 = scalar_lea.sflag [#allocation3], 1
    %278 = vsyncpa %s277, 1
    %279 = vsyncpa [#allocation6], 1
    %280 = vsyncpa [#allocation4], 1
    %s281 = scalar_lea.sflag [#allocation4], 1
    %282 = vsyncpa %s281, 1

</llo_original>
